<compile_context>
chip_gen: v7x
topology: tpu7x:2x2x1
jax: 0.10.0
libtpu: 0.0.40
codegen_flags: <defaults>
</compile_context>

<pallas_src>
import jax
import jax.numpy as jnp
from jax.experimental import pallas as pl
from jax.experimental.pallas import tpu as pltpu

# ---- model hyper-parameters (small, consistent with the module) ----
B = 2            # batch
SQ = 8           # query sequence length
SKV = 8          # key/value sequence length
H = 32           # hidden_size
FFN = 64         # ffn_size
NH = 4           # num_heads
DH = H // NH     # per-head dim
EPS = 1e-5       # nn.LayerNorm default eps

RQ = B * SQ      # stacked query rows   (16)
RK = B * SKV     # stacked key/value rows (16)
NEG = -1e30      # cross-batch attention mask value

# packed-parameter buffer layout (every weight band starts at lane 0)
PC = 3 * H                  # width: widest band is [Wq|Wk|Wv] = 96
VROW = 3 * H + FFN          # first of the 8 gain/bias rows (160)
PR = VROW + 8               # total rows (168)


def _layer_norm(v, g, b):
    mu = jnp.mean(v, axis=-1, keepdims=True)
    c = v - mu
    var = jnp.mean(c * c, axis=-1, keepdims=True)
    return c * jax.lax.rsqrt(var + EPS) * g + b


def encoder_layer_kernel(xkv_ref, bias_ref, p_ref, out_ref):
    xkv = xkv_ref[...]                       # (RQ+RK, H) rows: [x ; kv]
    bias = bias_ref[...]                     # (NH*RQ, RK) block-diag bias

    # ---- carve parameters out of the packed buffer (all lane-0 bands) ----
    w_qkv = p_ref[0:H, 0:3 * H]              # (H, 3H)  [Wq*scale | Wk | Wv]
    w_1 = p_ref[2 * H:3 * H, 0:FFN]          # (H, FFN)
    w_2 = p_ref[3 * H:3 * H + FFN, 0:H]      # (FFN, H)
    ln1_g = p_ref[VROW + 0:VROW + 1, 0:H]
    ln1_b = p_ref[VROW + 1:VROW + 2, 0:H]
    b_qkv = p_ref[VROW + 2:VROW + 3, 0:3 * H]
    b_o = p_ref[VROW + 3:VROW + 4, 0:H]
    ln2_g = p_ref[VROW + 4:VROW + 5, 0:H]
    ln2_b = p_ref[VROW + 5:VROW + 6, 0:H]
    b_1 = p_ref[VROW + 6:VROW + 7, 0:FFN]
    b_2 = p_ref[VROW + 7:VROW + 8, 0:H]

    # ---- single pre-LN pass over the stacked [x ; kv] rows ----
    nrm = _layer_norm(xkv, ln1_g, ln1_b)                      # (RQ+RK, H)

    # ---- fused QKV projection (q scale pre-folded into Wq/bq) ----
    proj = jnp.dot(nrm, w_qkv, preferred_element_type=jnp.float32) + b_qkv
    q = proj[0:RQ, 0:H]                                       # (RQ, H)
    k = proj[RQ:RQ + RK, H:2 * H]                              # (RK, H)
    v = proj[RQ:RQ + RK, 2 * H:3 * H]                          # (RK, H)

    # ---- per-head attention over the block-diagonal (batch-masked) scores,
    #      accumulating directly into the output projection ----
    attn = jnp.zeros((RQ, H), jnp.float32)
    for h in range(NH):
        c0 = h * DH
        q_h = q[:, c0:c0 + DH]                                 # (RQ, DH)
        k_h = k[:, c0:c0 + DH]                                 # (RK, DH)
        v_h = v[:, c0:c0 + DH]                                 # (RK, DH)
        s = jax.lax.dot_general(
            q_h, k_h, (((1,), (1,)), ((), ())),
            preferred_element_type=jnp.float32)                # (RQ, RK)
        s = s + bias[h * RQ:(h + 1) * RQ, :]                   # bias + batch mask
        s = s - jnp.max(s, axis=-1, keepdims=True)
        e = jnp.exp(s)
        p = e * pl.reciprocal(jnp.sum(e, axis=-1, keepdims=True), approx=True)
        ctx_h = jnp.dot(p, v_h, preferred_element_type=jnp.float32)  # (RQ, DH)
        wo_h = p_ref[H + c0:H + c0 + DH, 0:H]                  # sublane band of Wo
        attn = attn + jnp.dot(ctx_h, wo_h,
                              preferred_element_type=jnp.float32)

    # ---- attention output bias + residual ----
    x = xkv[0:RQ, :]
    x1 = x + attn + b_o

    # ---- FFN (Linear -> ReLU -> Linear) + residual ----
    y2 = _layer_norm(x1, ln2_g, ln2_b)
    h1 = jnp.maximum(
        jnp.dot(y2, w_1, preferred_element_type=jnp.float32) + b_1, 0.0)
    ffn = jnp.dot(h1, w_2, preferred_element_type=jnp.float32) + b_2

    out_ref[...] = (x1 + ffn).astype(out_ref.dtype)            # single store


def pack_params(params):
    """Pack all 16 parameter tensors into one (PR, PC) f32 buffer.

    Every weight lives in its own row band starting at lane 0; the 1/sqrt(DH)
    query scale is folded into Wq / bq (one-time, host side).
    """
    (ln1_g, ln1_b, wq, bq, wk, bk, wv, bv, wo, bo,
     ln2_g, ln2_b, w1, b1, w2, b2) = params
    scale = DH ** -0.5
    wq = jnp.asarray(wq, jnp.float32) * scale
    bq = jnp.asarray(bq, jnp.float32) * scale

    def band(mat):
        mat = jnp.asarray(mat, jnp.float32)
        return jnp.pad(mat, ((0, 0), (0, PC - mat.shape[1])))

    def row(vec):
        vec = jnp.asarray(vec, jnp.float32).reshape(1, -1)
        return jnp.pad(vec, ((0, 0), (0, PC - vec.shape[1])))

    qkv = jnp.concatenate(
        [wq, jnp.asarray(wk, jnp.float32), jnp.asarray(wv, jnp.float32)],
        axis=1)                                                # (H, 3H)
    b_qkv = jnp.concatenate(
        [bq.reshape(-1), jnp.asarray(bk, jnp.float32).reshape(-1),
         jnp.asarray(bv, jnp.float32).reshape(-1)])            # (3H,)

    packed = jnp.concatenate([
        band(qkv),                          # rows   0: 32  [Wq|Wk|Wv]
        band(jnp.asarray(wo, jnp.float32)),  # rows  32: 64  Wo
        band(jnp.asarray(w1, jnp.float32)),  # rows  64: 96  W1
        band(jnp.asarray(w2, jnp.float32)),  # rows  96:160  W2
        row(ln1_g), row(ln1_b), row(b_qkv), row(bo),
        row(ln2_g), row(ln2_b), row(b1), row(b2),
    ], axis=0)
    assert packed.shape == (PR, PC)
    return packed


def _build_bias_slab(attn_bias):
    """(B, NH, SQ, SKV) -> (NH*B*SQ, B*SKV) with cross-batch blocks masked."""
    bias_t = attn_bias.transpose(1, 0, 2, 3)                   # (NH, B, SQ, SKV)
    same_batch = jnp.arange(B)[:, None] == jnp.arange(B)[None, :]
    slab = jnp.where(same_batch[None, :, None, :, None],
                     bias_t[:, :, :, None, :],
                     jnp.float32(NEG))                          # (NH,B,SQ,B,SKV)
    return slab.reshape(NH * RQ, RK).astype(jnp.float32)


@jax.jit
def encoder_layer(x, kv, attn_bias, packed_params):
    # wrapper-side layout plumbing: stack x/kv rows, flatten bias to 2-D.
    xkv = jnp.concatenate(
        [x.reshape(RQ, H), kv.reshape(RK, H)], axis=0).astype(jnp.float32)
    bias_slab = _build_bias_slab(attn_bias)

    out2d = pl.pallas_call(
        encoder_layer_kernel,
        out_shape=jax.ShapeDtypeStruct((RQ, H), x.dtype),
        grid_spec=pltpu.PrefetchScalarGridSpec(
            num_scalar_prefetch=0,
            grid=(1,),
            in_specs=[
                pl.BlockSpec((RQ + RK, H), lambda g: (0, 0)),     # stacked x/kv
                pl.BlockSpec((NH * RQ, RK), lambda g: (0, 0)),    # bias slab
                pl.BlockSpec((PR, PC), lambda g: (0, 0)),         # packed params
            ],
            out_specs=pl.BlockSpec((RQ, H), lambda g: (0, 0)),
        ),
        compiler_params=pltpu.CompilerParams(
            dimension_semantics=("arbitrary",)),
    )(xkv, bias_slab, packed_params)
    return out2d.reshape(B, SQ, H)


def reference_forward(x, kv, attn_bias, params):
    """Pure-JAX reference mirroring the PyTorch module (eval mode)."""
    (ln1_g, ln1_b, wq, bq, wk, bk, wv, bv, wo, bo,
     ln2_g, ln2_b, w1, b1, w2, b2) = params
    y = _layer_norm(x, ln1_g, ln1_b)
    kvn = _layer_norm(kv, ln1_g, ln1_b)
    q = y @ wq + bq
    k = kvn @ wk + bk
    v = kvn @ wv + bv
    qh = q.reshape(B, SQ, NH, DH).transpose(0, 2, 1, 3) * (DH ** -0.5)
    kh = k.reshape(B, SKV, NH, DH).transpose(0, 2, 1, 3)
    vh = v.reshape(B, SKV, NH, DH).transpose(0, 2, 1, 3)
    s = jnp.einsum("bhqd,bhkd->bhqk", qh, kh) + attn_bias
    p = jax.nn.softmax(s, axis=-1)
    ctx = jnp.einsum("bhqk,bhkd->bhqd", p, vh)
    ctx = ctx.transpose(0, 2, 1, 3).reshape(B, SQ, H)
    x1 = x + ctx @ wo + bo
    y2 = _layer_norm(x1, ln2_g, ln2_b)
    return x1 + jnp.maximum(y2 @ w1 + b1, 0.0) @ w2 + b2


def init_params(key):
    ks = jax.random.split(key, 12)
    scale = 0.05
    ln1_g = jnp.ones((H,), jnp.float32)
    ln1_b = jnp.zeros((H,), jnp.float32)
    wq = scale * jax.random.normal(ks[0], (H, H), jnp.float32)
    bq = scale * jax.random.normal(ks[1], (H,), jnp.float32)
    wk = scale * jax.random.normal(ks[2], (H, H), jnp.float32)
    bk = scale * jax.random.normal(ks[3], (H,), jnp.float32)
    wv = scale * jax.random.normal(ks[4], (H, H), jnp.float32)
    bv = scale * jax.random.normal(ks[5], (H,), jnp.float32)
    wo = scale * jax.random.normal(ks[6], (H, H), jnp.float32)
    bo = scale * jax.random.normal(ks[7], (H,), jnp.float32)
    ln2_g = jnp.ones((H,), jnp.float32)
    ln2_b = jnp.zeros((H,), jnp.float32)
    w1 = scale * jax.random.normal(ks[8], (H, FFN), jnp.float32)
    b1 = scale * jax.random.normal(ks[9], (FFN,), jnp.float32)
    w2 = scale * jax.random.normal(ks[10], (FFN, H), jnp.float32)
    b2 = scale * jax.random.normal(ks[11], (H,), jnp.float32)
    return (ln1_g, ln1_b, wq, bq, wk, bk, wv, bv, wo, bo,
            ln2_g, ln2_b, w1, b1, w2, b2)


if __name__ == "__main__":
    key = jax.random.PRNGKey(0)
    k_x, k_kv, k_bias, k_p = jax.random.split(key, 4)
    x = jax.random.normal(k_x, (B, SQ, H), jnp.float32)
    kv = jax.random.normal(k_kv, (B, SKV, H), jnp.float32)
    attn_bias = 0.1 * jax.random.normal(k_bias, (B, NH, SQ, SKV), jnp.float32)
    params = init_params(k_p)
    packed = pack_params(params)        # one-time weight preprocessing

    out = encoder_layer(x, kv, attn_bias, packed)
    out = jax.block_until_ready(out)

    ref = reference_forward(x, kv, attn_bias, params)
    assert out.shape == (B, SQ, H)
    # approx=True softmax reciprocal + fused-matmul reassociation -> slightly
    # looser tolerance than exact f32.
    assert jnp.allclose(out, ref, atol=2e-3, rtol=2e-3), (
        float(jnp.max(jnp.abs(out - ref))))

    print("KERNEL_OK")
</pallas_src>

<mosaic_0001>
module attributes {stable_mosaic.version = 11 : i64} {
  func.func @encoder_layer_kernel(%arg0: i32, %arg1: memref<32x32xf32, #tpu.memory_space<vmem>>, %arg2: memref<64x16xf32, #tpu.memory_space<vmem>>, %arg3: memref<168x96xf32, #tpu.memory_space<vmem>>, %arg4: memref<16x32xf32, #tpu.memory_space<vmem>>) attributes {dimension_semantics = [#tpu.dimension_semantics<arbitrary>], iteration_bounds = array<i64: 1>, scalar_prefetch = 0 : i64, scratch_operands = 0 : i64, tpu.core_type = #tpu.core_type<tc>, window_params = [{pipeline_mode = #tpu.pipeline_mode<synchronous>, transform_indices = @transform_0, window_bounds = array<i64: 32, 32>}, {pipeline_mode = #tpu.pipeline_mode<synchronous>, transform_indices = @transform_1, window_bounds = array<i64: 64, 16>}, {pipeline_mode = #tpu.pipeline_mode<synchronous>, transform_indices = @transform_2, window_bounds = array<i64: 168, 96>}, {pipeline_mode = #tpu.pipeline_mode<synchronous>, transform_indices = @transform_3, window_bounds = array<i64: 16, 32>}]} {
    %c0 = arith.constant 0 : index
    %c0_0 = arith.constant 0 : index
    %0 = vector.load %arg1[%c0, %c0_0] : memref<32x32xf32, #tpu.memory_space<vmem>>, vector<32x32xf32>
    %c0_1 = arith.constant 0 : index
    %c0_2 = arith.constant 0 : index
    %1 = vector.load %arg2[%c0_1, %c0_2] : memref<64x16xf32, #tpu.memory_space<vmem>>, vector<64x16xf32>
    %c0_3 = arith.constant 0 : index
    %c0_4 = arith.constant 0 : index
    %2 = vector.load %arg3[%c0_3, %c0_4] : memref<168x96xf32, #tpu.memory_space<vmem>>, vector<32x96xf32>
    %c64 = arith.constant 64 : index
    %c0_5 = arith.constant 0 : index
    %3 = vector.load %arg3[%c64, %c0_5] : memref<168x96xf32, #tpu.memory_space<vmem>>, vector<32x64xf32>
    %c96 = arith.constant 96 : index
    %c0_6 = arith.constant 0 : index
    %4 = vector.load %arg3[%c96, %c0_6] : memref<168x96xf32, #tpu.memory_space<vmem>>, vector<64x32xf32>
    %c160 = arith.constant 160 : index
    %c0_7 = arith.constant 0 : index
    %5 = vector.load %arg3[%c160, %c0_7] : memref<168x96xf32, #tpu.memory_space<vmem>>, vector<1x32xf32>
    %c161 = arith.constant 161 : index
    %c0_8 = arith.constant 0 : index
    %6 = vector.load %arg3[%c161, %c0_8] : memref<168x96xf32, #tpu.memory_space<vmem>>, vector<1x32xf32>
    %c162 = arith.constant 162 : index
    %c0_9 = arith.constant 0 : index
    %7 = vector.load %arg3[%c162, %c0_9] : memref<168x96xf32, #tpu.memory_space<vmem>>, vector<1x96xf32>
    %c163 = arith.constant 163 : index
    %c0_10 = arith.constant 0 : index
    %8 = vector.load %arg3[%c163, %c0_10] : memref<168x96xf32, #tpu.memory_space<vmem>>, vector<1x32xf32>
    %c164 = arith.constant 164 : index
    %c0_11 = arith.constant 0 : index
    %9 = vector.load %arg3[%c164, %c0_11] : memref<168x96xf32, #tpu.memory_space<vmem>>, vector<1x32xf32>
    %c165 = arith.constant 165 : index
    %c0_12 = arith.constant 0 : index
    %10 = vector.load %arg3[%c165, %c0_12] : memref<168x96xf32, #tpu.memory_space<vmem>>, vector<1x32xf32>
    %c166 = arith.constant 166 : index
    %c0_13 = arith.constant 0 : index
    %11 = vector.load %arg3[%c166, %c0_13] : memref<168x96xf32, #tpu.memory_space<vmem>>, vector<1x64xf32>
    %c167 = arith.constant 167 : index
    %c0_14 = arith.constant 0 : index
    %12 = vector.load %arg3[%c167, %c0_14] : memref<168x96xf32, #tpu.memory_space<vmem>>, vector<1x32xf32>
    %cst = arith.constant dense<0.000000e+00> : vector<32xf32>
    %13 = vector.multi_reduction <add>, %0, %cst [1] : vector<32x32xf32> to vector<32xf32>
    %14 = vector.shape_cast %13 : vector<32xf32> to vector<32x1xf32>
    %cst_15 = arith.constant 3.200000e+01 : f32
    %15 = vector.broadcast %cst_15 : f32 to vector<32x1xf32>
    %16 = arith.divf %14, %15 : vector<32x1xf32>
    %17 = vector.broadcast %16 : vector<32x1xf32> to vector<32x32xf32>
    %18 = arith.subf %0, %17 : vector<32x32xf32>
    %19 = arith.mulf %18, %18 : vector<32x32xf32>
    %cst_16 = arith.constant dense<0.000000e+00> : vector<32xf32>
    %20 = vector.multi_reduction <add>, %19, %cst_16 [1] : vector<32x32xf32> to vector<32xf32>
    %21 = vector.shape_cast %20 : vector<32xf32> to vector<32x1xf32>
    %cst_17 = arith.constant 3.200000e+01 : f32
    %22 = vector.broadcast %cst_17 : f32 to vector<32x1xf32>
    %23 = arith.divf %21, %22 : vector<32x1xf32>
    %cst_18 = arith.constant 9.99999974E-6 : f32
    %24 = vector.broadcast %cst_18 : f32 to vector<32x1xf32>
    %25 = arith.addf %23, %24 : vector<32x1xf32>
    %26 = math.rsqrt %25 : vector<32x1xf32>
    %27 = vector.broadcast %26 : vector<32x1xf32> to vector<32x32xf32>
    %28 = arith.mulf %18, %27 : vector<32x32xf32>
    %29 = vector.broadcast %5 : vector<1x32xf32> to vector<32x32xf32>
    %30 = arith.mulf %28, %29 : vector<32x32xf32>
    %31 = vector.broadcast %6 : vector<1x32xf32> to vector<32x32xf32>
    %32 = arith.addf %30, %31 : vector<32x32xf32>
    %cst_19 = arith.constant dense<0.000000e+00> : vector<32x96xf32>
    %33 = tpu.matmul %32, %2, %cst_19 {dimension_numbers = #tpu.dot_dimension_numbers<[1], [0], [0], [1], [0, 0, 1, 1], [], []>} : vector<32x32xf32>, vector<32x96xf32>, vector<32x96xf32> -> vector<32x96xf32>
    %34 = vector.broadcast %7 : vector<1x96xf32> to vector<32x96xf32>
    %35 = arith.addf %33, %34 : vector<32x96xf32>
    %36 = vector.extract_strided_slice %35 {offsets = [0, 0], sizes = [16, 32], strides = [1, 1]} : vector<32x96xf32> to vector<16x32xf32>
    %37 = vector.extract_strided_slice %35 {offsets = [16, 32], sizes = [16, 32], strides = [1, 1]} : vector<32x96xf32> to vector<16x32xf32>
    %38 = vector.extract_strided_slice %35 {offsets = [16, 64], sizes = [16, 32], strides = [1, 1]} : vector<32x96xf32> to vector<16x32xf32>
    %cst_20 = arith.constant 0.000000e+00 : f32
    %39 = vector.broadcast %cst_20 : f32 to vector<16x32xf32>
    %40 = vector.extract_strided_slice %36 {offsets = [0, 0], sizes = [16, 8], strides = [1, 1]} : vector<16x32xf32> to vector<16x8xf32>
    %41 = vector.extract_strided_slice %37 {offsets = [0, 0], sizes = [16, 8], strides = [1, 1]} : vector<16x32xf32> to vector<16x8xf32>
    %42 = vector.extract_strided_slice %38 {offsets = [0, 0], sizes = [16, 8], strides = [1, 1]} : vector<16x32xf32> to vector<16x8xf32>
    %cst_21 = arith.constant dense<0.000000e+00> : vector<16x16xf32>
    %43 = tpu.matmul %40, %41, %cst_21 {dimension_numbers = #tpu.dot_dimension_numbers<[1], [1], [0], [0], [0, 0, 1, 0], [], []>} : vector<16x8xf32>, vector<16x8xf32>, vector<16x16xf32> -> vector<16x16xf32>
    %44 = vector.extract_strided_slice %1 {offsets = [0, 0], sizes = [16, 16], strides = [1, 1]} : vector<64x16xf32> to vector<16x16xf32>
    %45 = arith.addf %43, %44 : vector<16x16xf32>
    %cst_22 = arith.constant dense<0xFF800000> : vector<16xf32>
    %46 = vector.multi_reduction <maximumf>, %45, %cst_22 [1] : vector<16x16xf32> to vector<16xf32>
    %47 = vector.shape_cast %46 : vector<16xf32> to vector<16x1xf32>
    %48 = vector.broadcast %47 : vector<16x1xf32> to vector<16x16xf32>
    %49 = arith.subf %45, %48 : vector<16x16xf32>
    %50 = math.exp %49 : vector<16x16xf32>
    %cst_23 = arith.constant dense<0.000000e+00> : vector<16xf32>
    %51 = vector.multi_reduction <add>, %50, %cst_23 [1] : vector<16x16xf32> to vector<16xf32>
    %52 = vector.shape_cast %51 : vector<16xf32> to vector<16x1xf32>
    %53 = tpu.reciprocal %52 {approx = true} : vector<16x1xf32> -> vector<16x1xf32>
    %54 = vector.broadcast %53 : vector<16x1xf32> to vector<16x16xf32>
    %55 = arith.mulf %50, %54 : vector<16x16xf32>
    %cst_24 = arith.constant dense<0.000000e+00> : vector<16x8xf32>
    %56 = tpu.matmul %55, %42, %cst_24 {dimension_numbers = #tpu.dot_dimension_numbers<[1], [0], [0], [1], [0, 0, 1, 1], [], []>} : vector<16x16xf32>, vector<16x8xf32>, vector<16x8xf32> -> vector<16x8xf32>
    %c32 = arith.constant 32 : index
    %c0_25 = arith.constant 0 : index
    %57 = vector.load %arg3[%c32, %c0_25] : memref<168x96xf32, #tpu.memory_space<vmem>>, vector<8x32xf32>
    %cst_26 = arith.constant dense<0.000000e+00> : vector<16x32xf32>
    %58 = tpu.matmul %56, %57, %cst_26 {dimension_numbers = #tpu.dot_dimension_numbers<[1], [0], [0], [1], [0, 0, 1, 1], [], []>} : vector<16x8xf32>, vector<8x32xf32>, vector<16x32xf32> -> vector<16x32xf32>
    %59 = arith.addf %39, %58 : vector<16x32xf32>
    %60 = vector.extract_strided_slice %36 {offsets = [0, 8], sizes = [16, 8], strides = [1, 1]} : vector<16x32xf32> to vector<16x8xf32>
    %61 = vector.extract_strided_slice %37 {offsets = [0, 8], sizes = [16, 8], strides = [1, 1]} : vector<16x32xf32> to vector<16x8xf32>
    %62 = vector.extract_strided_slice %38 {offsets = [0, 8], sizes = [16, 8], strides = [1, 1]} : vector<16x32xf32> to vector<16x8xf32>
    %cst_27 = arith.constant dense<0.000000e+00> : vector<16x16xf32>
    %63 = tpu.matmul %60, %61, %cst_27 {dimension_numbers = #tpu.dot_dimension_numbers<[1], [1], [0], [0], [0, 0, 1, 0], [], []>} : vector<16x8xf32>, vector<16x8xf32>, vector<16x16xf32> -> vector<16x16xf32>
    %64 = vector.extract_strided_slice %1 {offsets = [16, 0], sizes = [16, 16], strides = [1, 1]} : vector<64x16xf32> to vector<16x16xf32>
    %65 = arith.addf %63, %64 : vector<16x16xf32>
    %cst_28 = arith.constant dense<0xFF800000> : vector<16xf32>
    %66 = vector.multi_reduction <maximumf>, %65, %cst_28 [1] : vector<16x16xf32> to vector<16xf32>
    %67 = vector.shape_cast %66 : vector<16xf32> to vector<16x1xf32>
    %68 = vector.broadcast %67 : vector<16x1xf32> to vector<16x16xf32>
    %69 = arith.subf %65, %68 : vector<16x16xf32>
    %70 = math.exp %69 : vector<16x16xf32>
    %cst_29 = arith.constant dense<0.000000e+00> : vector<16xf32>
    %71 = vector.multi_reduction <add>, %70, %cst_29 [1] : vector<16x16xf32> to vector<16xf32>
    %72 = vector.shape_cast %71 : vector<16xf32> to vector<16x1xf32>
    %73 = tpu.reciprocal %72 {approx = true} : vector<16x1xf32> -> vector<16x1xf32>
    %74 = vector.broadcast %73 : vector<16x1xf32> to vector<16x16xf32>
    %75 = arith.mulf %70, %74 : vector<16x16xf32>
    %cst_30 = arith.constant dense<0.000000e+00> : vector<16x8xf32>
    %76 = tpu.matmul %75, %62, %cst_30 {dimension_numbers = #tpu.dot_dimension_numbers<[1], [0], [0], [1], [0, 0, 1, 1], [], []>} : vector<16x16xf32>, vector<16x8xf32>, vector<16x8xf32> -> vector<16x8xf32>
    %c40 = arith.constant 40 : index
    %c0_31 = arith.constant 0 : index
    %77 = vector.load %arg3[%c40, %c0_31] : memref<168x96xf32, #tpu.memory_space<vmem>>, vector<8x32xf32>
    %cst_32 = arith.constant dense<0.000000e+00> : vector<16x32xf32>
    %78 = tpu.matmul %76, %77, %cst_32 {dimension_numbers = #tpu.dot_dimension_numbers<[1], [0], [0], [1], [0, 0, 1, 1], [], []>} : vector<16x8xf32>, vector<8x32xf32>, vector<16x32xf32> -> vector<16x32xf32>
    %79 = arith.addf %59, %78 : vector<16x32xf32>
    %80 = vector.extract_strided_slice %36 {offsets = [0, 16], sizes = [16, 8], strides = [1, 1]} : vector<16x32xf32> to vector<16x8xf32>
    %81 = vector.extract_strided_slice %37 {offsets = [0, 16], sizes = [16, 8], strides = [1, 1]} : vector<16x32xf32> to vector<16x8xf32>
    %82 = vector.extract_strided_slice %38 {offsets = [0, 16], sizes = [16, 8], strides = [1, 1]} : vector<16x32xf32> to vector<16x8xf32>
    %cst_33 = arith.constant dense<0.000000e+00> : vector<16x16xf32>
    %83 = tpu.matmul %80, %81, %cst_33 {dimension_numbers = #tpu.dot_dimension_numbers<[1], [1], [0], [0], [0, 0, 1, 0], [], []>} : vector<16x8xf32>, vector<16x8xf32>, vector<16x16xf32> -> vector<16x16xf32>
    %84 = vector.extract_strided_slice %1 {offsets = [32, 0], sizes = [16, 16], strides = [1, 1]} : vector<64x16xf32> to vector<16x16xf32>
    %85 = arith.addf %83, %84 : vector<16x16xf32>
    %cst_34 = arith.constant dense<0xFF800000> : vector<16xf32>
    %86 = vector.multi_reduction <maximumf>, %85, %cst_34 [1] : vector<16x16xf32> to vector<16xf32>
    %87 = vector.shape_cast %86 : vector<16xf32> to vector<16x1xf32>
    %88 = vector.broadcast %87 : vector<16x1xf32> to vector<16x16xf32>
    %89 = arith.subf %85, %88 : vector<16x16xf32>
    %90 = math.exp %89 : vector<16x16xf32>
    %cst_35 = arith.constant dense<0.000000e+00> : vector<16xf32>
    %91 = vector.multi_reduction <add>, %90, %cst_35 [1] : vector<16x16xf32> to vector<16xf32>
    %92 = vector.shape_cast %91 : vector<16xf32> to vector<16x1xf32>
    %93 = tpu.reciprocal %92 {approx = true} : vector<16x1xf32> -> vector<16x1xf32>
    %94 = vector.broadcast %93 : vector<16x1xf32> to vector<16x16xf32>
    %95 = arith.mulf %90, %94 : vector<16x16xf32>
    %cst_36 = arith.constant dense<0.000000e+00> : vector<16x8xf32>
    %96 = tpu.matmul %95, %82, %cst_36 {dimension_numbers = #tpu.dot_dimension_numbers<[1], [0], [0], [1], [0, 0, 1, 1], [], []>} : vector<16x16xf32>, vector<16x8xf32>, vector<16x8xf32> -> vector<16x8xf32>
    %c48 = arith.constant 48 : index
    %c0_37 = arith.constant 0 : index
    %97 = vector.load %arg3[%c48, %c0_37] : memref<168x96xf32, #tpu.memory_space<vmem>>, vector<8x32xf32>
    %cst_38 = arith.constant dense<0.000000e+00> : vector<16x32xf32>
    %98 = tpu.matmul %96, %97, %cst_38 {dimension_numbers = #tpu.dot_dimension_numbers<[1], [0], [0], [1], [0, 0, 1, 1], [], []>} : vector<16x8xf32>, vector<8x32xf32>, vector<16x32xf32> -> vector<16x32xf32>
    %99 = arith.addf %79, %98 : vector<16x32xf32>
    %100 = vector.extract_strided_slice %36 {offsets = [0, 24], sizes = [16, 8], strides = [1, 1]} : vector<16x32xf32> to vector<16x8xf32>
    %101 = vector.extract_strided_slice %37 {offsets = [0, 24], sizes = [16, 8], strides = [1, 1]} : vector<16x32xf32> to vector<16x8xf32>
    %102 = vector.extract_strided_slice %38 {offsets = [0, 24], sizes = [16, 8], strides = [1, 1]} : vector<16x32xf32> to vector<16x8xf32>
    %cst_39 = arith.constant dense<0.000000e+00> : vector<16x16xf32>
    %103 = tpu.matmul %100, %101, %cst_39 {dimension_numbers = #tpu.dot_dimension_numbers<[1], [1], [0], [0], [0, 0, 1, 0], [], []>} : vector<16x8xf32>, vector<16x8xf32>, vector<16x16xf32> -> vector<16x16xf32>
    %104 = vector.extract_strided_slice %1 {offsets = [48, 0], sizes = [16, 16], strides = [1, 1]} : vector<64x16xf32> to vector<16x16xf32>
    %105 = arith.addf %103, %104 : vector<16x16xf32>
    %cst_40 = arith.constant dense<0xFF800000> : vector<16xf32>
    %106 = vector.multi_reduction <maximumf>, %105, %cst_40 [1] : vector<16x16xf32> to vector<16xf32>
    %107 = vector.shape_cast %106 : vector<16xf32> to vector<16x1xf32>
    %108 = vector.broadcast %107 : vector<16x1xf32> to vector<16x16xf32>
    %109 = arith.subf %105, %108 : vector<16x16xf32>
    %110 = math.exp %109 : vector<16x16xf32>
    %cst_41 = arith.constant dense<0.000000e+00> : vector<16xf32>
    %111 = vector.multi_reduction <add>, %110, %cst_41 [1] : vector<16x16xf32> to vector<16xf32>
    %112 = vector.shape_cast %111 : vector<16xf32> to vector<16x1xf32>
    %113 = tpu.reciprocal %112 {approx = true} : vector<16x1xf32> -> vector<16x1xf32>
    %114 = vector.broadcast %113 : vector<16x1xf32> to vector<16x16xf32>
    %115 = arith.mulf %110, %114 : vector<16x16xf32>
    %cst_42 = arith.constant dense<0.000000e+00> : vector<16x8xf32>
    %116 = tpu.matmul %115, %102, %cst_42 {dimension_numbers = #tpu.dot_dimension_numbers<[1], [0], [0], [1], [0, 0, 1, 1], [], []>} : vector<16x16xf32>, vector<16x8xf32>, vector<16x8xf32> -> vector<16x8xf32>
    %c56 = arith.constant 56 : index
    %c0_43 = arith.constant 0 : index
    %117 = vector.load %arg3[%c56, %c0_43] : memref<168x96xf32, #tpu.memory_space<vmem>>, vector<8x32xf32>
    %cst_44 = arith.constant dense<0.000000e+00> : vector<16x32xf32>
    %118 = tpu.matmul %116, %117, %cst_44 {dimension_numbers = #tpu.dot_dimension_numbers<[1], [0], [0], [1], [0, 0, 1, 1], [], []>} : vector<16x8xf32>, vector<8x32xf32>, vector<16x32xf32> -> vector<16x32xf32>
    %119 = arith.addf %99, %118 : vector<16x32xf32>
    %120 = vector.extract_strided_slice %0 {offsets = [0, 0], sizes = [16, 32], strides = [1, 1]} : vector<32x32xf32> to vector<16x32xf32>
    %121 = arith.addf %120, %119 : vector<16x32xf32>
    %122 = vector.broadcast %8 : vector<1x32xf32> to vector<16x32xf32>
    %123 = arith.addf %121, %122 : vector<16x32xf32>
    %cst_45 = arith.constant dense<0.000000e+00> : vector<16xf32>
    %124 = vector.multi_reduction <add>, %123, %cst_45 [1] : vector<16x32xf32> to vector<16xf32>
    %125 = vector.shape_cast %124 : vector<16xf32> to vector<16x1xf32>
    %cst_46 = arith.constant 3.200000e+01 : f32
    %126 = vector.broadcast %cst_46 : f32 to vector<16x1xf32>
    %127 = arith.divf %125, %126 : vector<16x1xf32>
    %128 = vector.broadcast %127 : vector<16x1xf32> to vector<16x32xf32>
    %129 = arith.subf %123, %128 : vector<16x32xf32>
    %130 = arith.mulf %129, %129 : vector<16x32xf32>
    %cst_47 = arith.constant dense<0.000000e+00> : vector<16xf32>
    %131 = vector.multi_reduction <add>, %130, %cst_47 [1] : vector<16x32xf32> to vector<16xf32>
    %132 = vector.shape_cast %131 : vector<16xf32> to vector<16x1xf32>
    %cst_48 = arith.constant 3.200000e+01 : f32
    %133 = vector.broadcast %cst_48 : f32 to vector<16x1xf32>
    %134 = arith.divf %132, %133 : vector<16x1xf32>
    %cst_49 = arith.constant 9.99999974E-6 : f32
    %135 = vector.broadcast %cst_49 : f32 to vector<16x1xf32>
    %136 = arith.addf %134, %135 : vector<16x1xf32>
    %137 = math.rsqrt %136 : vector<16x1xf32>
    %138 = vector.broadcast %137 : vector<16x1xf32> to vector<16x32xf32>
    %139 = arith.mulf %129, %138 : vector<16x32xf32>
    %140 = vector.broadcast %9 : vector<1x32xf32> to vector<16x32xf32>
    %141 = arith.mulf %139, %140 : vector<16x32xf32>
    %142 = vector.broadcast %10 : vector<1x32xf32> to vector<16x32xf32>
    %143 = arith.addf %141, %142 : vector<16x32xf32>
    %cst_50 = arith.constant dense<0.000000e+00> : vector<16x64xf32>
    %144 = tpu.matmul %143, %3, %cst_50 {dimension_numbers = #tpu.dot_dimension_numbers<[1], [0], [0], [1], [0, 0, 1, 1], [], []>} : vector<16x32xf32>, vector<32x64xf32>, vector<16x64xf32> -> vector<16x64xf32>
    %145 = vector.broadcast %11 : vector<1x64xf32> to vector<16x64xf32>
    %146 = arith.addf %144, %145 : vector<16x64xf32>
    %cst_51 = arith.constant 0.000000e+00 : f32
    %147 = vector.broadcast %cst_51 : f32 to vector<16x64xf32>
    %148 = arith.maximumf %146, %147 : vector<16x64xf32>
    %cst_52 = arith.constant dense<0.000000e+00> : vector<16x32xf32>
    %149 = tpu.matmul %148, %4, %cst_52 {dimension_numbers = #tpu.dot_dimension_numbers<[1], [0], [0], [1], [0, 0, 1, 1], [], []>} : vector<16x64xf32>, vector<64x32xf32>, vector<16x32xf32> -> vector<16x32xf32>
    %150 = vector.broadcast %12 : vector<1x32xf32> to vector<16x32xf32>
    %151 = arith.addf %149, %150 : vector<16x32xf32>
    %152 = arith.addf %123, %151 : vector<16x32xf32>
    %c0_53 = arith.constant 0 : index
    %c0_54 = arith.constant 0 : index
    %153 = vector.load %arg4[%c0_53, %c0_54] : memref<16x32xf32, #tpu.memory_space<vmem>>, vector<16x32xf32>
    tpu.vector_store %arg4[%c0_53, %c0_54], %152 {strides = array<i32>} : memref<16x32xf32, #tpu.memory_space<vmem>>, vector<16x32xf32>,
    return
  }
  func.func @transform_0(%arg0: i32) -> (i32, i32) {
    %c0_i32 = arith.constant 0 : i32
    %c0_i32_0 = arith.constant 0 : i32
    %c0_i32_1 = arith.constant 0 : i32
    return %c0_i32, %c0_i32_0 : i32, i32
  }
  func.func @transform_1(%arg0: i32) -> (i32, i32) {
    %c0_i32 = arith.constant 0 : i32
    %c0_i32_0 = arith.constant 0 : i32
    %c0_i32_1 = arith.constant 0 : i32
    return %c0_i32, %c0_i32_0 : i32, i32
  }
  func.func @transform_2(%arg0: i32) -> (i32, i32) {
    %c0_i32 = arith.constant 0 : i32
    %c0_i32_0 = arith.constant 0 : i32
    %c0_i32_1 = arith.constant 0 : i32
    return %c0_i32, %c0_i32_0 : i32, i32
  }
  func.func @transform_3(%arg0: i32) -> (i32, i32) {
    %c0_i32 = arith.constant 0 : i32
    %c0_i32_0 = arith.constant 0 : i32
    %c0_i32_1 = arith.constant 0 : i32
    return %c0_i32, %c0_i32_0 : i32, i32
  }
}

</mosaic_0001>

<llo_original>
// kernel: encoder_layer.1
$region0: #{encoder_layer.1}
  #allocation0 [shape = 'u32[]', space=smem, size = 0x4, offset = 0x4, fixed_abs, tag = 'smem constant byte address 0x4 - core index']
  #allocation1 [shape = 'u32[144,128]{1,0:T(1,128)}', space=vmem, size = 0x12000, scoped, tag = 'internal scratch']
  %s0 = inlined_call_operand.vmem [shape: f32[32,32], index: 0, kind: input, shape index: {}]
  %s1 = inlined_call_operand.vmem [shape: f32[64,16], index: 1, kind: input, shape index: {}]
  %s2 = inlined_call_operand.vmem [shape: f32[168,96], index: 2, kind: input, shape index: {}]
  %s3 = inlined_call_operand.hbm [shape: f32[16,32], index: 3, kind: output, shape index: {}]
  %s4 = sld [smem:[#allocation0]]
  $region22: #{encoder_layer.1} parent=0
    _
  %s6 = ssub.s32 1, %s4
  %s7 = scalar_select 0, %s6, %s4
  $region1: #{encoder_layer.1} parent=0
    #allocation2 [shape = 'u8[8192]{0}', space=vmem, size = 0x2000, scoped, tag = 'output window, operand 0, single buffered']
    #allocation3 [shape = 's32[1]{0}', space=sflag, size = 0x4, scoped, tag = 'scoped memory for encoder_layer.1']
    %8 = vsyncpa [#allocation3], 0
    // Predicated region
    $region2: #{encoder_layer.1} parent=1 // pred_check
      _
    $region3: #{encoder_layer.1} parent=1 // pred_check_branch
      %10 = sbr.rel (0) target = $region5
    $region4: #{encoder_layer.1} parent=1 // pred_region
      _
    $region5: #{encoder_layer.1} parent=1 // pred_fallthru
      _
    // Predicated region
    $region6: #{encoder_layer.1} parent=1 // pred_check
      _
    $region7: #{encoder_layer.1} parent=1 // pred_check_branch
      %12 = sbr.rel (0) target = $region9
    $region8: #{encoder_layer.1} parent=1 // pred_region
      _
    $region9: #{encoder_layer.1} parent=1 // pred_fallthru
      _
    // Predicated region
    $region10: #{encoder_layer.1} parent=1 // pred_check
      _
    $region11: #{encoder_layer.1} parent=1 // pred_check_branch
      %14 = sbr.rel (0) target = $region13
    $region12: #{encoder_layer.1} parent=1 // pred_region
      _
    $region13: #{encoder_layer.1} parent=1 // pred_fallthru
      _
    %v15 = vld [vmem:[%s0] sm:$0xff]
    %v16 = vld [vmem:[%s0 + $0x8] sm:$0xff]
    %v17 = vld [vmem:[%s0 + $0x10] sm:$0xff]
    %v18 = vld [vmem:[%s0 + $0x18] sm:$0xff]
    %v19 = vld [vmem:[%s1] sm:$0xff]
    %v20 = vld [vmem:[%s1 + $0x8] sm:$0xff]
    %v21 = vld [vmem:[%s1 + $0x10] sm:$0xff]
    %v22 = vld [vmem:[%s1 + $0x18] sm:$0xff]
    %v23 = vld [vmem:[%s1 + $0x20] sm:$0xff]
    %v24 = vld [vmem:[%s1 + $0x28] sm:$0xff]
    %v25 = vld [vmem:[%s1 + $0x30] sm:$0xff]
    %v26 = vld [vmem:[%s1 + $0x38] sm:$0xff]
    %v27 = vld [vmem:[%s2] sm:$0xff]
    %v28 = vld [vmem:[%s2 + $0x8] sm:$0xff]
    %v29 = vld [vmem:[%s2 + $0x10] sm:$0xff]
    %v30 = vld [vmem:[%s2 + $0x18] sm:$0xff]
    %v31 = vld [vmem:[%s2 + $0x40] sm:$0xff]
    %v32 = vld [vmem:[%s2 + $0x48] sm:$0xff]
    %v33 = vld [vmem:[%s2 + $0x50] sm:$0xff]
    %v34 = vld [vmem:[%s2 + $0x58] sm:$0xff]
    %v35 = vld [vmem:[%s2 + $0x60] sm:$0xff]
    %v36 = vld [vmem:[%s2 + $0x68] sm:$0xff]
    %v37 = vld [vmem:[%s2 + $0x70] sm:$0xff]
    %v38 = vld [vmem:[%s2 + $0x78] sm:$0xff]
    %v39 = vld [vmem:[%s2 + $0x80] sm:$0xff]
    %v40 = vld [vmem:[%s2 + $0x88] sm:$0xff]
    %v41 = vld [vmem:[%s2 + $0x90] sm:$0xff]
    %v42 = vld [vmem:[%s2 + $0x98] sm:$0xff]
    %v43 = vld [vmem:[%s2 + $0xa0] sm:$0x1]
    %v44 = vld [vmem:[%s2 + $0xa1] sm:$0x1]
    %v45 = vld [vmem:[%s2 + $0xa2] sm:$0x1]
    %v46 = vld [vmem:[%s2 + $0xa3] sm:$0x1]
    %v47 = vld [vmem:[%s2 + $0xa4] sm:$0x1]
    %v48 = vld [vmem:[%s2 + $0xa5] sm:$0x1]
    %v49 = vld [vmem:[%s2 + $0xa6] sm:$0x1]
    %v50 = vld [vmem:[%s2 + $0xa7] sm:$0x1]
    %vm51 = vcmask 261120
    %v52 = vsel %vm51, %v15, 0.0
    %53 = vadd.xlane.f32.xlu0 %v52
    %v54 = vpop.xlane.xlu0 %53
    %v55 = vsel %vm51, %v16, 0.0
    %56 = vadd.xlane.f32.xlu0 %v55
    %v57 = vpop.xlane.xlu0 %56
    %v58 = vsel %vm51, %v17, 0.0
    %59 = vadd.xlane.f32.xlu0 %v58
    %v60 = vpop.xlane.xlu0 %59
    %v61 = vsel %vm51, %v18, 0.0
    %62 = vadd.xlane.f32.xlu0 %v61
    %v63 = vpop.xlane.xlu0 %62
    %v64 = vrcp.pop 32.0
    %v65 = vmul.f32 %v54, %v64
    %v66 = vmul.f32 %v57, %v64
    %v67 = vmul.f32 %v60, %v64
    %v68 = vmul.f32 %v63, %v64
    %v69 = vsub.f32 %v15, %v65
    %v70 = vsub.f32 %v16, %v66
    %v71 = vsub.f32 %v17, %v67
    %v72 = vsub.f32 %v18, %v68
    %v73 = vmul.f32 %v69, %v69
    %v74 = vmul.f32 %v70, %v70
    %v75 = vmul.f32 %v71, %v71
    %v76 = vmul.f32 %v72, %v72
    %v77 = vsel %vm51, %v73, 0.0
    %78 = vadd.xlane.f32.xlu0 %v77
    %v79 = vpop.xlane.xlu0 %78
    %v80 = vsel %vm51, %v74, 0.0
    %81 = vadd.xlane.f32.xlu0 %v80
    %v82 = vpop.xlane.xlu0 %81
    %v83 = vsel %vm51, %v75, 0.0
    %84 = vadd.xlane.f32.xlu0 %v83
    %v85 = vpop.xlane.xlu0 %84
    %v86 = vsel %vm51, %v76, 0.0
    %87 = vadd.xlane.f32.xlu0 %v86
    %v88 = vpop.xlane.xlu0 %87
    %v89 = vmul.f32 %v79, %v64
    %v90 = vmul.f32 %v82, %v64
    %v91 = vmul.f32 %v85, %v64
    %v92 = vmul.f32 %v88, %v64
    %v93 = vadd.f32 %v89, 1e-05
    %v94 = vadd.f32 %v90, 1e-05
    %v95 = vadd.f32 %v91, 1e-05
    %v96 = vadd.f32 %v92, 1e-05
    %v97 = vrsqrt.pop %v93
    %v98 = vrsqrt.pop %v94
    %v99 = vrsqrt.pop %v95
    %v100 = vrsqrt.pop %v96
    %v101 = vmul.f32 %v69, %v97
    %v102 = vmul.f32 %v70, %v98
    %v103 = vmul.f32 %v71, %v99
    %v104 = vmul.f32 %v72, %v100
    %v105 = vlaneseq
    %v106 = vshrl.u32 %v105, 7
    %v107 = vsub.s32 0, %v106
    %v108 = vrot.slane %v43, %v107
    %v109 = vmul.f32 %v101, %v108
    %v110 = vmul.f32 %v102, %v108
    %v111 = vmul.f32 %v103, %v108
    %v112 = vmul.f32 %v104, %v108
    %v113 = vlaneseq
    %v114 = vshrl.u32 %v113, 7
    %v115 = vsub.s32 0, %v114
    %v116 = vrot.slane %v44, %v115
    %v117 = vadd.f32 %v109, %v116
    %v118 = vadd.f32 %v110, %v116
    %v119 = vadd.f32 %v111, %v116
    %v120 = vadd.f32 %v112, %v116
    %v121 = vlaneseq
    %v122 = vshrl.u32 %v121, 7
    %v123 = vsub.s32 0, %v122
    %v124 = vrot.slane %v45, %v123
    %v126 = vsel %vm51, %v117, 0
    %v129 = vsel %vm51, %v118, 0
    %v132 = vsel %vm51, %v119, 0
    %v135 = vsel %vm51, %v120, 0
    %137 = vmatprep.subr.mxu0 0.0
    %138 = vmatpush1.msra.mxu0 %v27
    %139 = vmatprep.subr.mxu0 0.0
    %140 = vmatpush1.msra.mxu0 %v28
    %141 = vmatprep.subr.mxu0 0.0
    %142 = vmatpush1.msra.mxu0 %v29
    %143 = vmatprep.subr.mxu0 0.0
    %144 = vmatpush1.msra.mxu0 %v30
    %145 = vmatprep.subr.mxu0 0.0
    %146 = vmatpush1.msra.mxu0 0.0
    %147 = vmatprep.subr.mxu0 0.0
    %148 = vmatpush1.msra.mxu0 0.0
    %149 = vmatprep.subr.mxu0 0.0
    %150 = vmatpush1.msra.mxu0 0.0
    %151 = vmatprep.subr.mxu0 0.0
    %152 = vmatpush1.msra.mxu0 0.0
    %153 = vmatprep.subr.mxu0 0.0
    %154 = vmatpush1.msra.mxu0 0.0
    %155 = vmatprep.subr.mxu0 0.0
    %156 = vmatpush1.msra.mxu0 0.0
    %157 = vmatprep.subr.mxu0 0.0
    %158 = vmatpush1.msra.mxu0 0.0
    %159 = vmatprep.subr.mxu0 0.0
    %160 = vmatpush1.msra.mxu0 0.0
    %161 = vmatprep.subr.mxu0 0.0
    %162 = vmatpush1.msra.mxu0 0.0
    %163 = vmatprep.subr.mxu0 0.0
    %164 = vmatpush1.msra.mxu0 0.0
    %165 = vmatprep.subr.mxu0 0.0
    %166 = vmatpush1.msra.mxu0 0.0
    %167 = vmatprep.subr.mxu0 0.0
    %168 = vmatpush1.msra.mxu0 0.0
    %169 = vmatprep.subr.mxu0 0.0
    %170 = vmatpush1.msra.mxu0 0.0
    %171 = vmatprep.subr.mxu0 0.0
    %172 = vmatpush1.msra.mxu0 0.0
    %173 = vmatprep.subr.mxu0 0.0
    %174 = vmatpush1.msra.mxu0 0.0
    %175 = vmatprep.subr.mxu0 0.0
    %176 = vmatpush1.msra.mxu0 0.0
    %177 = vmatprep.subr.mxu0 0.0
    %178 = vmatpush1.msra.mxu0 0.0
    %179 = vmatprep.subr.mxu0 0.0
    %180 = vmatpush1.msra.mxu0 0.0
    %181 = vmatprep.subr.mxu0 0.0
    %182 = vmatpush1.msra.mxu0 0.0
    %183 = vmatprep.subr.mxu0 0.0
    %184 = vmatpush1.msra.mxu0 0.0
    %185 = vmatprep.subr.mxu0 0.0
    %186 = vmatpush1.msra.mxu0 0.0
    %187 = vmatprep.subr.mxu0 0.0
    %188 = vmatpush1.msra.mxu0 0.0
    %189 = vmatprep.subr.mxu0 0.0
    %190 = vmatpush1.msra.mxu0 0.0
    %191 = vmatprep.subr.mxu0 0.0
    %192 = vmatpush1.msra.mxu0 0.0
    %193 = vmatprep.subr.mxu0 0.0
    %194 = vmatpush1.msra.mxu0 0.0
    %195 = vmatprep.subr.mxu0 0.0
    %196 = vmatpush1.msra.mxu0 0.0
    %197 = vmatprep.subr.mxu0 0.0
    %198 = vmatpush1.msra.mxu0 0.0
    %199 = vmatprep.subr.mxu0 0.0
    %200 = vmatpush1.msra.mxu0 0.0
    %201 = vmatprep.mubr.f32.mxu0 0.0
    %202 = vmatmul.mubr.f32.gmra.mrb[0].mxu0 %v126
    %v203 = vpop.f32.mrb[0].mxu0
    %v204 = vadd.f32 %v124, %v203
    %v205 = vpop.f32.mrb[0].mxu0
    %206 = vmatprep.mubr.f32.mxu0 0.0
    %207 = vmatmul.mubr.f32.gmra.mrb[0].mxu0 %v129
    %v208 = vpop.f32.mrb[0].mxu0
    %v209 = vadd.f32 %v124, %v208
    %v210 = vpop.f32.mrb[0].mxu0
    %211 = vmatprep.mubr.f32.mxu0 0.0
    %212 = vmatmul.mubr.f32.gmra.mrb[0].mxu0 %v132
    %v213 = vpop.f32.mrb[0].mxu0
    %v214 = vadd.f32 %v124, %v213
    %v215 = vpop.f32.mrb[0].mxu0
    %216 = vmatprep.mubr.f32.mxu0 0.0
    %217 = vmatmul.mubr.f32.gmra.mrb[0].mxu0 %v135
    %v218 = vpop.f32.mrb[0].mxu0
    %v219 = vadd.f32 %v124, %v218
    %v220 = vpop.f32.mrb[0].mxu0
    %221 = vdwg.mxu0
    %224 = vrot.lane.b32.xlu0 %v214, 96
    %v225 = vpop.permute.xlu0 %224
    %226 = vrot.lane.b32.xlu0 %v219, 96
    %v227 = vpop.permute.xlu0 %226
    %vm228 = vcmask 64512
    %v230 = vsel %vm228, %v204, 0
    %v233 = vsel %vm228, %v209, 0
    %v235 = vsel %vm228, %v225, 0
    %v237 = vsel %vm228, %v227, 0
    %239 = vmatprep.subr.mxu0 0.0
    %240 = vmatpush1.xpose.msra.mxu0 %v235
    %241 = vmatprep.subr.mxu0 0.0
    %242 = vmatpush1.xpose.msra.mxu0 %v237
    %243 = vmatprep.subr.mxu0 0.0
    %244 = vmatpush1.xpose.msra.mxu0 0.0
    %245 = vmatprep.subr.mxu0 0.0
    %246 = vmatpush1.xpose.msra.mxu0 0.0
    %247 = vmatprep.subr.mxu0 0.0
    %248 = vmatpush1.xpose.msra.mxu0 0.0
    %249 = vmatprep.subr.mxu0 0.0
    %250 = vmatpush1.xpose.msra.mxu0 0.0
    %251 = vmatprep.subr.mxu0 0.0
    %252 = vmatpush1.xpose.msra.mxu0 0.0
    %253 = vmatprep.subr.mxu0 0.0
    %254 = vmatpush1.xpose.msra.mxu0 0.0
    %255 = vmatprep.subr.mxu0 0.0
    %256 = vmatpush1.xpose.msra.mxu0 0.0
    %257 = vmatprep.subr.mxu0 0.0
    %258 = vmatpush1.xpose.msra.mxu0 0.0
    %259 = vmatprep.subr.mxu0 0.0
    %260 = vmatpush1.xpose.msra.mxu0 0.0
    %261 = vmatprep.subr.mxu0 0.0
    %262 = vmatpush1.xpose.msra.mxu0 0.0
    %263 = vmatprep.subr.mxu0 0.0
    %264 = vmatpush1.xpose.msra.mxu0 0.0
    %265 = vmatprep.subr.mxu0 0.0
    %266 = vmatpush1.xpose.msra.mxu0 0.0
    %267 = vmatprep.subr.mxu0 0.0
    %268 = vmatpush1.xpose.msra.mxu0 0.0
    %269 = vmatprep.subr.mxu0 0.0
    %270 = vmatpush1.xpose.msra.mxu0 0.0
    %271 = vmatprep.subr.mxu0 0.0
    %272 = vmatpush1.xpose.msra.mxu0 0.0
    %273 = vmatprep.subr.mxu0 0.0
    %274 = vmatpush1.xpose.msra.mxu0 0.0
    %275 = vmatprep.subr.mxu0 0.0
    %276 = vmatpush1.xpose.msra.mxu0 0.0
    %277 = vmatprep.subr.mxu0 0.0
    %278 = vmatpush1.xpose.msra.mxu0 0.0
    %279 = vmatprep.subr.mxu0 0.0
    %280 = vmatpush1.xpose.msra.mxu0 0.0
    %281 = vmatprep.subr.mxu0 0.0
    %282 = vmatpush1.xpose.msra.mxu0 0.0
    %283 = vmatprep.subr.mxu0 0.0
    %284 = vmatpush1.xpose.msra.mxu0 0.0
    %285 = vmatprep.subr.mxu0 0.0
    %286 = vmatpush1.xpose.msra.mxu0 0.0
    %287 = vmatprep.subr.mxu0 0.0
    %288 = vmatpush1.xpose.msra.mxu0 0.0
    %289 = vmatprep.subr.mxu0 0.0
    %290 = vmatpush1.xpose.msra.mxu0 0.0
    %291 = vmatprep.subr.mxu0 0.0
    %292 = vmatpush1.xpose.msra.mxu0 0.0
    %293 = vmatprep.subr.mxu0 0.0
    %294 = vmatpush1.xpose.msra.mxu0 0.0
    %295 = vmatprep.subr.mxu0 0.0
    %296 = vmatpush1.xpose.msra.mxu0 0.0
    %297 = vmatprep.subr.mxu0 0.0
    %298 = vmatpush1.xpose.msra.mxu0 0.0
    %299 = vmatprep.subr.mxu0 0.0
    %300 = vmatpush1.xpose.msra.mxu0 0.0
    %301 = vmatprep.subr.mxu0 0.0
    %302 = vmatpush1.xpose.msra.mxu0 0.0
    %303 = vmatprep.mubr.f32.mxu0 0.0
    %304 = vmatmul.mubr.f32.gmra.mrb[0].mxu0 %v230
    %v305 = vpop.f32.mrb[0].mxu0
    %v306 = vadd.f32 %v19, %v305
    %v307 = vpop.f32.mrb[0].mxu0
    %308 = vmatprep.mubr.f32.mxu0 0.0
    %309 = vmatmul.mubr.f32.gmra.mrb[0].mxu0 %v233
    %v310 = vpop.f32.mrb[0].mxu0
    %v311 = vadd.f32 %v20, %v310
    %v312 = vpop.f32.mrb[0].mxu0
    %313 = vdwg.mxu0
    %vm314 = vcmask 130048
    %v315 = vsel %vm314, %v306, -inf
    %316 = vmax.xlane.f32.xlu0 %v315
    %v317 = vpop.xlane.xlu0 %316
    %v318 = vsel %vm314, %v311, -inf
    %319 = vmax.xlane.f32.xlu0 %v318
    %v320 = vpop.xlane.xlu0 %319
    %v321 = vsub.f32 %v306, %v317
    %v322 = vsub.f32 %v311, %v320
    %v323 = vmul.f32 %v321, 1.442695
    %v324 = vpow.pop %v323
    %v325 = vmul.f32 %v322, 1.442695
    %v326 = vpow.pop %v325
    %v327 = vsel %vm314, %v324, 0.0
    %328 = vadd.xlane.f32.xlu0 %v327
    %v329 = vpop.xlane.xlu0 %328
    %v330 = vsel %vm314, %v326, 0.0
    %331 = vadd.xlane.f32.xlu0 %v330
    %v332 = vpop.xlane.xlu0 %331
    %v333 = vrcp.pop %v329
    %v334 = vrcp.pop %v332
    %v335 = vmul.f32 %v324, %v333
    %v336 = vmul.f32 %v326, %v334
    %337 = vrot.lane.b32.xlu0 %v214, 64
    %v338 = vpop.permute.xlu0 %337
    %339 = vrot.lane.b32.xlu0 %v219, 64
    %v340 = vpop.permute.xlu0 %339
    %v344 = vsel %vm314, %v335, 0
    %v347 = vsel %vm314, %v336, 0
    %349 = vmatprep.subr.mxu0 0.0
    %350 = vmatpush1.msra.mxu0 %v338
    %351 = vmatprep.subr.mxu0 0.0
    %352 = vmatpush1.msra.mxu0 %v340
    %353 = vmatprep.subr.mxu0 0.0
    %354 = vmatpush1.msra.mxu0 0.0
    %355 = vmatprep.subr.mxu0 0.0
    %356 = vmatpush1.msra.mxu0 0.0
    %357 = vmatprep.subr.mxu0 0.0
    %358 = vmatpush1.msra.mxu0 0.0
    %359 = vmatprep.subr.mxu0 0.0
    %360 = vmatpush1.msra.mxu0 0.0
    %361 = vmatprep.subr.mxu0 0.0
    %362 = vmatpush1.msra.mxu0 0.0
    %363 = vmatprep.subr.mxu0 0.0
    %364 = vmatpush1.msra.mxu0 0.0
    %365 = vmatprep.subr.mxu0 0.0
    %366 = vmatpush1.msra.mxu0 0.0
    %367 = vmatprep.subr.mxu0 0.0
    %368 = vmatpush1.msra.mxu0 0.0
    %369 = vmatprep.subr.mxu0 0.0
    %370 = vmatpush1.msra.mxu0 0.0
    %371 = vmatprep.subr.mxu0 0.0
    %372 = vmatpush1.msra.mxu0 0.0
    %373 = vmatprep.subr.mxu0 0.0
    %374 = vmatpush1.msra.mxu0 0.0
    %375 = vmatprep.subr.mxu0 0.0
    %376 = vmatpush1.msra.mxu0 0.0
    %377 = vmatprep.subr.mxu0 0.0
    %378 = vmatpush1.msra.mxu0 0.0
    %379 = vmatprep.subr.mxu0 0.0
    %380 = vmatpush1.msra.mxu0 0.0
    %381 = vmatprep.subr.mxu0 0.0
    %382 = vmatpush1.msra.mxu0 0.0
    %383 = vmatprep.subr.mxu0 0.0
    %384 = vmatpush1.msra.mxu0 0.0
    %385 = vmatprep.subr.mxu0 0.0
    %386 = vmatpush1.msra.mxu0 0.0
    %387 = vmatprep.subr.mxu0 0.0
    %388 = vmatpush1.msra.mxu0 0.0
    %389 = vmatprep.subr.mxu0 0.0
    %390 = vmatpush1.msra.mxu0 0.0
    %391 = vmatprep.subr.mxu0 0.0
    %392 = vmatpush1.msra.mxu0 0.0
    %393 = vmatprep.subr.mxu0 0.0
    %394 = vmatpush1.msra.mxu0 0.0
    %395 = vmatprep.subr.mxu0 0.0
    %396 = vmatpush1.msra.mxu0 0.0
    %397 = vmatprep.subr.mxu0 0.0
    %398 = vmatpush1.msra.mxu0 0.0
    %399 = vmatprep.subr.mxu0 0.0
    %400 = vmatpush1.msra.mxu0 0.0
    %401 = vmatprep.subr.mxu0 0.0
    %402 = vmatpush1.msra.mxu0 0.0
    %403 = vmatprep.subr.mxu0 0.0
    %404 = vmatpush1.msra.mxu0 0.0
    %405 = vmatprep.subr.mxu0 0.0
    %406 = vmatpush1.msra.mxu0 0.0
    %407 = vmatprep.subr.mxu0 0.0
    %408 = vmatpush1.msra.mxu0 0.0
    %409 = vmatprep.subr.mxu0 0.0
    %410 = vmatpush1.msra.mxu0 0.0
    %411 = vmatprep.subr.mxu0 0.0
    %412 = vmatpush1.msra.mxu0 0.0
    %413 = vmatprep.mubr.f32.mxu0 0.0
    %414 = vmatmul.mubr.f32.gmra.mrb[0].mxu0 %v344
    %v415 = vpop.f32.mrb[0].mxu0
    %v416 = vadd.f32 0.0, %v415
    %v417 = vpop.f32.mrb[0].mxu0
    %418 = vmatprep.mubr.f32.mxu0 0.0
    %419 = vmatmul.mubr.f32.gmra.mrb[0].mxu0 %v347
    %v420 = vpop.f32.mrb[0].mxu0
    %v421 = vadd.f32 0.0, %v420
    %v422 = vpop.f32.mrb[0].mxu0
    %423 = vdwg.mxu0
    %v424 = vld [vmem:[%s2 + $0x20] sm:$0xff]
    %425 = vrot.lane.b32.xlu0 %v204, 120
    %v426 = vpop.permute.xlu0 %425
    %427 = vrot.lane.b32.xlu0 %v209, 120
    %v428 = vpop.permute.xlu0 %427
    %429 = vrot.lane.b32.xlu0 %v214, 88
    %v430 = vpop.permute.xlu0 %429
    %431 = vrot.lane.b32.xlu0 %v219, 88
    %v432 = vpop.permute.xlu0 %431
    %v433 = vsel %vm228, %v426, 0
    %v435 = vsel %vm228, %v428, 0
    %v437 = vsel %vm228, %v430, 0
    %v439 = vsel %vm228, %v432, 0
    %441 = vmatprep.subr.mxu0 0.0
    %442 = vmatpush1.xpose.msra.mxu0 %v437
    %443 = vmatprep.subr.mxu0 0.0
    %444 = vmatpush1.xpose.msra.mxu0 %v439
    %445 = vmatprep.subr.mxu0 0.0
    %446 = vmatpush1.xpose.msra.mxu0 0.0
    %447 = vmatprep.subr.mxu0 0.0
    %448 = vmatpush1.xpose.msra.mxu0 0.0
    %449 = vmatprep.subr.mxu0 0.0
    %450 = vmatpush1.xpose.msra.mxu0 0.0
    %451 = vmatprep.subr.mxu0 0.0
    %452 = vmatpush1.xpose.msra.mxu0 0.0
    %453 = vmatprep.subr.mxu0 0.0
    %454 = vmatpush1.xpose.msra.mxu0 0.0
    %455 = vmatprep.subr.mxu0 0.0
    %456 = vmatpush1.xpose.msra.mxu0 0.0
    %457 = vmatprep.subr.mxu0 0.0
    %458 = vmatpush1.xpose.msra.mxu0 0.0
    %459 = vmatprep.subr.mxu0 0.0
    %460 = vmatpush1.xpose.msra.mxu0 0.0
    %461 = vmatprep.subr.mxu0 0.0
    %462 = vmatpush1.xpose.msra.mxu0 0.0
    %463 = vmatprep.subr.mxu0 0.0
    %464 = vmatpush1.xpose.msra.mxu0 0.0
    %465 = vmatprep.subr.mxu0 0.0
    %466 = vmatpush1.xpose.msra.mxu0 0.0
    %467 = vmatprep.subr.mxu0 0.0
    %468 = vmatpush1.xpose.msra.mxu0 0.0
    %469 = vmatprep.subr.mxu0 0.0
    %470 = vmatpush1.xpose.msra.mxu0 0.0
    %471 = vmatprep.subr.mxu0 0.0
    %472 = vmatpush1.xpose.msra.mxu0 0.0
    %473 = vmatprep.subr.mxu0 0.0
    %474 = vmatpush1.xpose.msra.mxu0 0.0
    %475 = vmatprep.subr.mxu0 0.0
    %476 = vmatpush1.xpose.msra.mxu0 0.0
    %477 = vmatprep.subr.mxu0 0.0
    %478 = vmatpush1.xpose.msra.mxu0 0.0
    %479 = vmatprep.subr.mxu0 0.0
    %480 = vmatpush1.xpose.msra.mxu0 0.0
    %481 = vmatprep.subr.mxu0 0.0
    %482 = vmatpush1.xpose.msra.mxu0 0.0
    %483 = vmatprep.subr.mxu0 0.0
    %484 = vmatpush1.xpose.msra.mxu0 0.0
    %485 = vmatprep.subr.mxu0 0.0
    %486 = vmatpush1.xpose.msra.mxu0 0.0
    %487 = vmatprep.subr.mxu0 0.0
    %488 = vmatpush1.xpose.msra.mxu0 0.0
    %489 = vmatprep.subr.mxu0 0.0
    %490 = vmatpush1.xpose.msra.mxu0 0.0
    %491 = vmatprep.subr.mxu0 0.0
    %492 = vmatpush1.xpose.msra.mxu0 0.0
    %493 = vmatprep.subr.mxu0 0.0
    %494 = vmatpush1.xpose.msra.mxu0 0.0
    %495 = vmatprep.subr.mxu0 0.0
    %496 = vmatpush1.xpose.msra.mxu0 0.0
    %497 = vmatprep.subr.mxu0 0.0
    %498 = vmatpush1.xpose.msra.mxu0 0.0
    %499 = vmatprep.subr.mxu0 0.0
    %500 = vmatpush1.xpose.msra.mxu0 0.0
    %501 = vmatprep.subr.mxu0 0.0
    %502 = vmatpush1.xpose.msra.mxu0 0.0
    %503 = vmatprep.subr.mxu0 0.0
    %504 = vmatpush1.xpose.msra.mxu0 0.0
    %505 = vmatprep.mubr.f32.mxu0 0.0
    %506 = vmatmul.mubr.f32.gmra.mrb[0].mxu0 %v433
    %v507 = vpop.f32.mrb[0].mxu0
    %v508 = vadd.f32 %v21, %v507
    %v509 = vpop.f32.mrb[0].mxu0
    %510 = vmatprep.mubr.f32.mxu0 0.0
    %511 = vmatmul.mubr.f32.gmra.mrb[0].mxu0 %v435
    %v512 = vpop.f32.mrb[0].mxu0
    %v513 = vadd.f32 %v22, %v512
    %v514 = vpop.f32.mrb[0].mxu0
    %515 = vdwg.mxu0
    %v516 = vsel %vm314, %v508, -inf
    %517 = vmax.xlane.f32.xlu0 %v516
    %v518 = vpop.xlane.xlu0 %517
    %v519 = vsel %vm314, %v513, -inf
    %520 = vmax.xlane.f32.xlu0 %v519
    %v521 = vpop.xlane.xlu0 %520
    %v522 = vsub.f32 %v508, %v518
    %v523 = vsub.f32 %v513, %v521
    %v524 = vmul.f32 %v522, 1.442695
    %v525 = vpow.pop %v524
    %v526 = vmul.f32 %v523, 1.442695
    %v527 = vpow.pop %v526
    %v528 = vsel %vm314, %v525, 0.0
    %529 = vadd.xlane.f32.xlu0 %v528
    %v530 = vpop.xlane.xlu0 %529
    %v531 = vsel %vm314, %v527, 0.0
    %532 = vadd.xlane.f32.xlu0 %v531
    %v533 = vpop.xlane.xlu0 %532
    %v534 = vrcp.pop %v530
    %v535 = vrcp.pop %v533
    %v536 = vmul.f32 %v525, %v534
    %v537 = vmul.f32 %v527, %v535
    %538 = vrot.lane.b32.xlu0 %v214, 56
    %v539 = vpop.permute.xlu0 %538
    %540 = vrot.lane.b32.xlu0 %v219, 56
    %v541 = vpop.permute.xlu0 %540
    %v545 = vsel %vm314, %v536, 0
    %v548 = vsel %vm314, %v537, 0
    %550 = vmatprep.subr.mxu0 0.0
    %551 = vmatpush1.msra.mxu0 %v539
    %552 = vmatprep.subr.mxu0 0.0
    %553 = vmatpush1.msra.mxu0 %v541
    %554 = vmatprep.subr.mxu0 0.0
    %555 = vmatpush1.msra.mxu0 0.0
    %556 = vmatprep.subr.mxu0 0.0
    %557 = vmatpush1.msra.mxu0 0.0
    %558 = vmatprep.subr.mxu0 0.0
    %559 = vmatpush1.msra.mxu0 0.0
    %560 = vmatprep.subr.mxu0 0.0
    %561 = vmatpush1.msra.mxu0 0.0
    %562 = vmatprep.subr.mxu0 0.0
    %563 = vmatpush1.msra.mxu0 0.0
    %564 = vmatprep.subr.mxu0 0.0
    %565 = vmatpush1.msra.mxu0 0.0
    %566 = vmatprep.subr.mxu0 0.0
    %567 = vmatpush1.msra.mxu0 0.0
    %568 = vmatprep.subr.mxu0 0.0
    %569 = vmatpush1.msra.mxu0 0.0
    %570 = vmatprep.subr.mxu0 0.0
    %571 = vmatpush1.msra.mxu0 0.0
    %572 = vmatprep.subr.mxu0 0.0
    %573 = vmatpush1.msra.mxu0 0.0
    %574 = vmatprep.subr.mxu0 0.0
    %575 = vmatpush1.msra.mxu0 0.0
    %576 = vmatprep.subr.mxu0 0.0
    %577 = vmatpush1.msra.mxu0 0.0
    %578 = vmatprep.subr.mxu0 0.0
    %579 = vmatpush1.msra.mxu0 0.0
    %580 = vmatprep.subr.mxu0 0.0
    %581 = vmatpush1.msra.mxu0 0.0
    %582 = vmatprep.subr.mxu0 0.0
    %583 = vmatpush1.msra.mxu0 0.0
    %584 = vmatprep.subr.mxu0 0.0
    %585 = vmatpush1.msra.mxu0 0.0
    %586 = vmatprep.subr.mxu0 0.0
    %587 = vmatpush1.msra.mxu0 0.0
    %588 = vmatprep.subr.mxu0 0.0
    %589 = vmatpush1.msra.mxu0 0.0
    %590 = vmatprep.subr.mxu0 0.0
    %591 = vmatpush1.msra.mxu0 0.0
    %592 = vmatprep.subr.mxu0 0.0
    %593 = vmatpush1.msra.mxu0 0.0
    %594 = vmatprep.subr.mxu0 0.0
    %595 = vmatpush1.msra.mxu0 0.0
    %596 = vmatprep.subr.mxu0 0.0
    %597 = vmatpush1.msra.mxu0 0.0
    %598 = vmatprep.subr.mxu0 0.0
    %599 = vmatpush1.msra.mxu0 0.0
    %600 = vmatprep.subr.mxu0 0.0
    %601 = vmatpush1.msra.mxu0 0.0
    %602 = vmatprep.subr.mxu0 0.0
    %603 = vmatpush1.msra.mxu0 0.0
    %604 = vmatprep.subr.mxu0 0.0
    %605 = vmatpush1.msra.mxu0 0.0
    %606 = vmatprep.subr.mxu0 0.0
    %607 = vmatpush1.msra.mxu0 0.0
    %608 = vmatprep.subr.mxu0 0.0
    %609 = vmatpush1.msra.mxu0 0.0
    %610 = vmatprep.subr.mxu0 0.0
    %611 = vmatpush1.msra.mxu0 0.0
    %612 = vmatprep.subr.mxu0 0.0
    %613 = vmatpush1.msra.mxu0 0.0
    %614 = vmatprep.mubr.f32.mxu0 0.0
    %615 = vmatmul.mubr.f32.gmra.mrb[0].mxu0 %v545
    %v616 = vpop.f32.mrb[0].mxu0
    %v617 = vadd.f32 0.0, %v616
    %v618 = vpop.f32.mrb[0].mxu0
    %619 = vmatprep.mubr.f32.mxu0 0.0
    %620 = vmatmul.mubr.f32.gmra.mrb[0].mxu0 %v548
    %v621 = vpop.f32.mrb[0].mxu0
    %v622 = vadd.f32 0.0, %v621
    %v623 = vpop.f32.mrb[0].mxu0
    %624 = vdwg.mxu0
    %v625 = vld [vmem:[%s2 + $0x28] sm:$0xff]
    %v627 = vsel %vm228, %v617, 0
    %v630 = vsel %vm228, %v622, 0
    %632 = vmatprep.subr.mxu0 0.0
    %633 = vmatpush1.msra.mxu0 %v625
    %634 = vmatprep.subr.mxu0 0.0
    %635 = vmatpush1.msra.mxu0 0.0
    %636 = vmatprep.subr.mxu0 0.0
    %637 = vmatpush1.msra.mxu0 0.0
    %638 = vmatprep.subr.mxu0 0.0
    %639 = vmatpush1.msra.mxu0 0.0
    %640 = vmatprep.subr.mxu0 0.0
    %641 = vmatpush1.msra.mxu0 0.0
    %642 = vmatprep.subr.mxu0 0.0
    %643 = vmatpush1.msra.mxu0 0.0
    %644 = vmatprep.subr.mxu0 0.0
    %645 = vmatpush1.msra.mxu0 0.0
    %646 = vmatprep.subr.mxu0 0.0
    %647 = vmatpush1.msra.mxu0 0.0
    %648 = vmatprep.subr.mxu0 0.0
    %649 = vmatpush1.msra.mxu0 0.0
    %650 = vmatprep.subr.mxu0 0.0
    %651 = vmatpush1.msra.mxu0 0.0
    %652 = vmatprep.subr.mxu0 0.0
    %653 = vmatpush1.msra.mxu0 0.0
    %654 = vmatprep.subr.mxu0 0.0
    %655 = vmatpush1.msra.mxu0 0.0
    %656 = vmatprep.subr.mxu0 0.0
    %657 = vmatpush1.msra.mxu0 0.0
    %658 = vmatprep.subr.mxu0 0.0
    %659 = vmatpush1.msra.mxu0 0.0
    %660 = vmatprep.subr.mxu0 0.0
    %661 = vmatpush1.msra.mxu0 0.0
    %662 = vmatprep.subr.mxu0 0.0
    %663 = vmatpush1.msra.mxu0 0.0
    %664 = vmatprep.subr.mxu0 0.0
    %665 = vmatpush1.msra.mxu0 0.0
    %666 = vmatprep.subr.mxu0 0.0
    %667 = vmatpush1.msra.mxu0 0.0
    %668 = vmatprep.subr.mxu0 0.0
    %669 = vmatpush1.msra.mxu0 0.0
    %670 = vmatprep.subr.mxu0 0.0
    %671 = vmatpush1.msra.mxu0 0.0
    %672 = vmatprep.subr.mxu0 0.0
    %673 = vmatpush1.msra.mxu0 0.0
    %674 = vmatprep.subr.mxu0 0.0
    %675 = vmatpush1.msra.mxu0 0.0
    %676 = vmatprep.subr.mxu0 0.0
    %677 = vmatpush1.msra.mxu0 0.0
    %678 = vmatprep.subr.mxu0 0.0
    %679 = vmatpush1.msra.mxu0 0.0
    %680 = vmatprep.subr.mxu0 0.0
    %681 = vmatpush1.msra.mxu0 0.0
    %682 = vmatprep.subr.mxu0 0.0
    %683 = vmatpush1.msra.mxu0 0.0
    %684 = vmatprep.subr.mxu0 0.0
    %685 = vmatpush1.msra.mxu0 0.0
    %686 = vmatprep.subr.mxu0 0.0
    %687 = vmatpush1.msra.mxu0 0.0
    %688 = vmatprep.subr.mxu0 0.0
    %689 = vmatpush1.msra.mxu0 0.0
    %690 = vmatprep.subr.mxu0 0.0
    %691 = vmatpush1.msra.mxu0 0.0
    %692 = vmatprep.subr.mxu0 0.0
    %693 = vmatpush1.msra.mxu0 0.0
    %694 = vmatprep.subr.mxu0 0.0
    %695 = vmatpush1.msra.mxu0 0.0
    %696 = vmatprep.mubr.f32.mxu0 0.0
    %697 = vmatmul.mubr.f32.gmra.mrb[0].mxu0 %v627
    %v698 = vpop.f32.mrb[0].mxu0
    %v699 = vadd.f32 0.0, %v698
    %v700 = vpop.f32.mrb[0].mxu0
    %701 = vmatprep.mubr.f32.mxu0 0.0
    %702 = vmatmul.mubr.f32.gmra.mrb[0].mxu0 %v630
    %v703 = vpop.f32.mrb[0].mxu0
    %v704 = vadd.f32 0.0, %v703
    %v705 = vpop.f32.mrb[0].mxu0
    %706 = vdwg.mxu0
    %v708 = vsel %vm228, %v416, 0
    %v711 = vsel %vm228, %v421, 0
    %713 = vmatprep.subr.mxu0 0.0
    %714 = vmatpush1.msra.mxu0 %v424
    %715 = vmatprep.subr.mxu0 0.0
    %716 = vmatpush1.msra.mxu0 0.0
    %717 = vmatprep.subr.mxu0 0.0
    %718 = vmatpush1.msra.mxu0 0.0
    %719 = vmatprep.subr.mxu0 0.0
    %720 = vmatpush1.msra.mxu0 0.0
    %721 = vmatprep.subr.mxu0 0.0
    %722 = vmatpush1.msra.mxu0 0.0
    %723 = vmatprep.subr.mxu0 0.0
    %724 = vmatpush1.msra.mxu0 0.0
    %725 = vmatprep.subr.mxu0 0.0
    %726 = vmatpush1.msra.mxu0 0.0
    %727 = vmatprep.subr.mxu0 0.0
    %728 = vmatpush1.msra.mxu0 0.0
    %729 = vmatprep.subr.mxu0 0.0
    %730 = vmatpush1.msra.mxu0 0.0
    %731 = vmatprep.subr.mxu0 0.0
    %732 = vmatpush1.msra.mxu0 0.0
    %733 = vmatprep.subr.mxu0 0.0
    %734 = vmatpush1.msra.mxu0 0.0
    %735 = vmatprep.subr.mxu0 0.0
    %736 = vmatpush1.msra.mxu0 0.0
    %737 = vmatprep.subr.mxu0 0.0
    %738 = vmatpush1.msra.mxu0 0.0
    %739 = vmatprep.subr.mxu0 0.0
    %740 = vmatpush1.msra.mxu0 0.0
    %741 = vmatprep.subr.mxu0 0.0
    %742 = vmatpush1.msra.mxu0 0.0
    %743 = vmatprep.subr.mxu0 0.0
    %744 = vmatpush1.msra.mxu0 0.0
    %745 = vmatprep.subr.mxu0 0.0
    %746 = vmatpush1.msra.mxu0 0.0
    %747 = vmatprep.subr.mxu0 0.0
    %748 = vmatpush1.msra.mxu0 0.0
    %749 = vmatprep.subr.mxu0 0.0
    %750 = vmatpush1.msra.mxu0 0.0
    %751 = vmatprep.subr.mxu0 0.0
    %752 = vmatpush1.msra.mxu0 0.0
    %753 = vmatprep.subr.mxu0 0.0
    %754 = vmatpush1.msra.mxu0 0.0
    %755 = vmatprep.subr.mxu0 0.0
    %756 = vmatpush1.msra.mxu0 0.0
    %757 = vmatprep.subr.mxu0 0.0
    %758 = vmatpush1.msra.mxu0 0.0
    %759 = vmatprep.subr.mxu0 0.0
    %760 = vmatpush1.msra.mxu0 0.0
    %761 = vmatprep.subr.mxu0 0.0
    %762 = vmatpush1.msra.mxu0 0.0
    %763 = vmatprep.subr.mxu0 0.0
    %764 = vmatpush1.msra.mxu0 0.0
    %765 = vmatprep.subr.mxu0 0.0
    %766 = vmatpush1.msra.mxu0 0.0
    %767 = vmatprep.subr.mxu0 0.0
    %768 = vmatpush1.msra.mxu0 0.0
    %769 = vmatprep.subr.mxu0 0.0
    %770 = vmatpush1.msra.mxu0 0.0
    %771 = vmatprep.subr.mxu0 0.0
    %772 = vmatpush1.msra.mxu0 0.0
    %773 = vmatprep.subr.mxu0 0.0
    %774 = vmatpush1.msra.mxu0 0.0
    %775 = vmatprep.subr.mxu0 0.0
    %776 = vmatpush1.msra.mxu0 0.0
    %777 = vmatprep.mubr.f32.mxu0 0.0
    %778 = vmatmul.mubr.f32.gmra.mrb[0].mxu0 %v708
    %v779 = vpop.f32.mrb[0].mxu0
    %v780 = vadd.f32 %v699, %v779
    %v781 = vpop.f32.mrb[0].mxu0
    %782 = vmatprep.mubr.f32.mxu0 0.0
    %783 = vmatmul.mubr.f32.gmra.mrb[0].mxu0 %v711
    %v784 = vpop.f32.mrb[0].mxu0
    %v785 = vadd.f32 %v704, %v784
    %v786 = vpop.f32.mrb[0].mxu0
    %787 = vdwg.mxu0
    %788 = vrot.lane.b32.xlu0 %v204, 112
    %v789 = vpop.permute.xlu0 %788
    %790 = vrot.lane.b32.xlu0 %v209, 112
    %v791 = vpop.permute.xlu0 %790
    %792 = vrot.lane.b32.xlu0 %v214, 80
    %v793 = vpop.permute.xlu0 %792
    %794 = vrot.lane.b32.xlu0 %v219, 80
    %v795 = vpop.permute.xlu0 %794
    %v796 = vsel %vm228, %v789, 0
    %v798 = vsel %vm228, %v791, 0
    %v800 = vsel %vm228, %v793, 0
    %v802 = vsel %vm228, %v795, 0
    %804 = vmatprep.subr.mxu0 0.0
    %805 = vmatpush1.xpose.msra.mxu0 %v800
    %806 = vmatprep.subr.mxu0 0.0
    %807 = vmatpush1.xpose.msra.mxu0 %v802
    %808 = vmatprep.subr.mxu0 0.0
    %809 = vmatpush1.xpose.msra.mxu0 0.0
    %810 = vmatprep.subr.mxu0 0.0
    %811 = vmatpush1.xpose.msra.mxu0 0.0
    %812 = vmatprep.subr.mxu0 0.0
    %813 = vmatpush1.xpose.msra.mxu0 0.0
    %814 = vmatprep.subr.mxu0 0.0
    %815 = vmatpush1.xpose.msra.mxu0 0.0
    %816 = vmatprep.subr.mxu0 0.0
    %817 = vmatpush1.xpose.msra.mxu0 0.0
    %818 = vmatprep.subr.mxu0 0.0
    %819 = vmatpush1.xpose.msra.mxu0 0.0
    %820 = vmatprep.subr.mxu0 0.0
    %821 = vmatpush1.xpose.msra.mxu0 0.0
    %822 = vmatprep.subr.mxu0 0.0
    %823 = vmatpush1.xpose.msra.mxu0 0.0
    %824 = vmatprep.subr.mxu0 0.0
    %825 = vmatpush1.xpose.msra.mxu0 0.0
    %826 = vmatprep.subr.mxu0 0.0
    %827 = vmatpush1.xpose.msra.mxu0 0.0
    %828 = vmatprep.subr.mxu0 0.0
    %829 = vmatpush1.xpose.msra.mxu0 0.0
    %830 = vmatprep.subr.mxu0 0.0
    %831 = vmatpush1.xpose.msra.mxu0 0.0
    %832 = vmatprep.subr.mxu0 0.0
    %833 = vmatpush1.xpose.msra.mxu0 0.0
    %834 = vmatprep.subr.mxu0 0.0
    %835 = vmatpush1.xpose.msra.mxu0 0.0
    %836 = vmatprep.subr.mxu0 0.0
    %837 = vmatpush1.xpose.msra.mxu0 0.0
    %838 = vmatprep.subr.mxu0 0.0
    %839 = vmatpush1.xpose.msra.mxu0 0.0
    %840 = vmatprep.subr.mxu0 0.0
    %841 = vmatpush1.xpose.msra.mxu0 0.0
    %842 = vmatprep.subr.mxu0 0.0
    %843 = vmatpush1.xpose.msra.mxu0 0.0
    %844 = vmatprep.subr.mxu0 0.0
    %845 = vmatpush1.xpose.msra.mxu0 0.0
    %846 = vmatprep.subr.mxu0 0.0
    %847 = vmatpush1.xpose.msra.mxu0 0.0
    %848 = vmatprep.subr.mxu0 0.0
    %849 = vmatpush1.xpose.msra.mxu0 0.0
    %850 = vmatprep.subr.mxu0 0.0
    %851 = vmatpush1.xpose.msra.mxu0 0.0
    %852 = vmatprep.subr.mxu0 0.0
    %853 = vmatpush1.xpose.msra.mxu0 0.0
    %854 = vmatprep.subr.mxu0 0.0
    %855 = vmatpush1.xpose.msra.mxu0 0.0
    %856 = vmatprep.subr.mxu0 0.0
    %857 = vmatpush1.xpose.msra.mxu0 0.0
    %858 = vmatprep.subr.mxu0 0.0
    %859 = vmatpush1.xpose.msra.mxu0 0.0
    %860 = vmatprep.subr.mxu0 0.0
    %861 = vmatpush1.xpose.msra.mxu0 0.0
    %862 = vmatprep.subr.mxu0 0.0
    %863 = vmatpush1.xpose.msra.mxu0 0.0
    %864 = vmatprep.subr.mxu0 0.0
    %865 = vmatpush1.xpose.msra.mxu0 0.0
    %866 = vmatprep.subr.mxu0 0.0
    %867 = vmatpush1.xpose.msra.mxu0 0.0
    %868 = vmatprep.mubr.f32.mxu0 0.0
    %869 = vmatmul.mubr.f32.gmra.mrb[0].mxu0 %v796
    %v870 = vpop.f32.mrb[0].mxu0
    %v871 = vadd.f32 %v23, %v870
    %v872 = vpop.f32.mrb[0].mxu0
    %873 = vmatprep.mubr.f32.mxu0 0.0
    %874 = vmatmul.mubr.f32.gmra.mrb[0].mxu0 %v798
    %v875 = vpop.f32.mrb[0].mxu0
    %v876 = vadd.f32 %v24, %v875
    %v877 = vpop.f32.mrb[0].mxu0
    %878 = vdwg.mxu0
    %v879 = vsel %vm314, %v871, -inf
    %880 = vmax.xlane.f32.xlu0 %v879
    %v881 = vpop.xlane.xlu0 %880
    %v882 = vsel %vm314, %v876, -inf
    %883 = vmax.xlane.f32.xlu0 %v882
    %v884 = vpop.xlane.xlu0 %883
    %v885 = vsub.f32 %v871, %v881
    %v886 = vsub.f32 %v876, %v884
    %v887 = vmul.f32 %v885, 1.442695
    %v888 = vpow.pop %v887
    %v889 = vmul.f32 %v886, 1.442695
    %v890 = vpow.pop %v889
    %v891 = vsel %vm314, %v888, 0.0
    %892 = vadd.xlane.f32.xlu0 %v891
    %v893 = vpop.xlane.xlu0 %892
    %v894 = vsel %vm314, %v890, 0.0
    %895 = vadd.xlane.f32.xlu0 %v894
    %v896 = vpop.xlane.xlu0 %895
    %v897 = vrcp.pop %v893
    %v898 = vrcp.pop %v896
    %v899 = vmul.f32 %v888, %v897
    %v900 = vmul.f32 %v890, %v898
    %901 = vrot.lane.b32.xlu0 %v214, 48
    %v902 = vpop.permute.xlu0 %901
    %903 = vrot.lane.b32.xlu0 %v219, 48
    %v904 = vpop.permute.xlu0 %903
    %v908 = vsel %vm314, %v899, 0
    %v911 = vsel %vm314, %v900, 0
    %913 = vmatprep.subr.mxu0 0.0
    %914 = vmatpush1.msra.mxu0 %v902
    %915 = vmatprep.subr.mxu0 0.0
    %916 = vmatpush1.msra.mxu0 %v904
    %917 = vmatprep.subr.mxu0 0.0
    %918 = vmatpush1.msra.mxu0 0.0
    %919 = vmatprep.subr.mxu0 0.0
    %920 = vmatpush1.msra.mxu0 0.0
    %921 = vmatprep.subr.mxu0 0.0
    %922 = vmatpush1.msra.mxu0 0.0
    %923 = vmatprep.subr.mxu0 0.0
    %924 = vmatpush1.msra.mxu0 0.0
    %925 = vmatprep.subr.mxu0 0.0
    %926 = vmatpush1.msra.mxu0 0.0
    %927 = vmatprep.subr.mxu0 0.0
    %928 = vmatpush1.msra.mxu0 0.0
    %929 = vmatprep.subr.mxu0 0.0
    %930 = vmatpush1.msra.mxu0 0.0
    %931 = vmatprep.subr.mxu0 0.0
    %932 = vmatpush1.msra.mxu0 0.0
    %933 = vmatprep.subr.mxu0 0.0
    %934 = vmatpush1.msra.mxu0 0.0
    %935 = vmatprep.subr.mxu0 0.0
    %936 = vmatpush1.msra.mxu0 0.0
    %937 = vmatprep.subr.mxu0 0.0
    %938 = vmatpush1.msra.mxu0 0.0
    %939 = vmatprep.subr.mxu0 0.0
    %940 = vmatpush1.msra.mxu0 0.0
    %941 = vmatprep.subr.mxu0 0.0
    %942 = vmatpush1.msra.mxu0 0.0
    %943 = vmatprep.subr.mxu0 0.0
    %944 = vmatpush1.msra.mxu0 0.0
    %945 = vmatprep.subr.mxu0 0.0
    %946 = vmatpush1.msra.mxu0 0.0
    %947 = vmatprep.subr.mxu0 0.0
    %948 = vmatpush1.msra.mxu0 0.0
    %949 = vmatprep.subr.mxu0 0.0
    %950 = vmatpush1.msra.mxu0 0.0
    %951 = vmatprep.subr.mxu0 0.0
    %952 = vmatpush1.msra.mxu0 0.0
    %953 = vmatprep.subr.mxu0 0.0
    %954 = vmatpush1.msra.mxu0 0.0
    %955 = vmatprep.subr.mxu0 0.0
    %956 = vmatpush1.msra.mxu0 0.0
    %957 = vmatprep.subr.mxu0 0.0
    %958 = vmatpush1.msra.mxu0 0.0
    %959 = vmatprep.subr.mxu0 0.0
    %960 = vmatpush1.msra.mxu0 0.0
    %961 = vmatprep.subr.mxu0 0.0
    %962 = vmatpush1.msra.mxu0 0.0
    %963 = vmatprep.subr.mxu0 0.0
    %964 = vmatpush1.msra.mxu0 0.0
    %965 = vmatprep.subr.mxu0 0.0
    %966 = vmatpush1.msra.mxu0 0.0
    %967 = vmatprep.subr.mxu0 0.0
    %968 = vmatpush1.msra.mxu0 0.0
    %969 = vmatprep.subr.mxu0 0.0
    %970 = vmatpush1.msra.mxu0 0.0
    %971 = vmatprep.subr.mxu0 0.0
    %972 = vmatpush1.msra.mxu0 0.0
    %973 = vmatprep.subr.mxu0 0.0
    %974 = vmatpush1.msra.mxu0 0.0
    %975 = vmatprep.subr.mxu0 0.0
    %976 = vmatpush1.msra.mxu0 0.0
    %977 = vmatprep.mubr.f32.mxu0 0.0
    %978 = vmatmul.mubr.f32.gmra.mrb[0].mxu0 %v908
    %v979 = vpop.f32.mrb[0].mxu0
    %v980 = vadd.f32 0.0, %v979
    %v981 = vpop.f32.mrb[0].mxu0
    %982 = vmatprep.mubr.f32.mxu0 0.0
    %983 = vmatmul.mubr.f32.gmra.mrb[0].mxu0 %v911
    %v984 = vpop.f32.mrb[0].mxu0
    %v985 = vadd.f32 0.0, %v984
    %v986 = vpop.f32.mrb[0].mxu0
    %987 = vdwg.mxu0
    %v988 = vld [vmem:[%s2 + $0x30] sm:$0xff]
    %v990 = vsel %vm228, %v980, 0
    %v993 = vsel %vm228, %v985, 0
    %995 = vmatprep.subr.mxu0 0.0
    %996 = vmatpush1.msra.mxu0 %v988
    %997 = vmatprep.subr.mxu0 0.0
    %998 = vmatpush1.msra.mxu0 0.0
    %999 = vmatprep.subr.mxu0 0.0
    %1000 = vmatpush1.msra.mxu0 0.0
    %1001 = vmatprep.subr.mxu0 0.0
    %1002 = vmatpush1.msra.mxu0 0.0
    %1003 = vmatprep.subr.mxu0 0.0
    %1004 = vmatpush1.msra.mxu0 0.0
    %1005 = vmatprep.subr.mxu0 0.0
    %1006 = vmatpush1.msra.mxu0 0.0
    %1007 = vmatprep.subr.mxu0 0.0
    %1008 = vmatpush1.msra.mxu0 0.0
    %1009 = vmatprep.subr.mxu0 0.0
    %1010 = vmatpush1.msra.mxu0 0.0
    %1011 = vmatprep.subr.mxu0 0.0
    %1012 = vmatpush1.msra.mxu0 0.0
    %1013 = vmatprep.subr.mxu0 0.0
    %1014 = vmatpush1.msra.mxu0 0.0
    %1015 = vmatprep.subr.mxu0 0.0
    %1016 = vmatpush1.msra.mxu0 0.0
    %1017 = vmatprep.subr.mxu0 0.0
    %1018 = vmatpush1.msra.mxu0 0.0
    %1019 = vmatprep.subr.mxu0 0.0
    %1020 = vmatpush1.msra.mxu0 0.0
    %1021 = vmatprep.subr.mxu0 0.0
    %1022 = vmatpush1.msra.mxu0 0.0
    %1023 = vmatprep.subr.mxu0 0.0
    %1024 = vmatpush1.msra.mxu0 0.0
    %1025 = vmatprep.subr.mxu0 0.0
    %1026 = vmatpush1.msra.mxu0 0.0
    %1027 = vmatprep.subr.mxu0 0.0
    %1028 = vmatpush1.msra.mxu0 0.0
    %1029 = vmatprep.subr.mxu0 0.0
    %1030 = vmatpush1.msra.mxu0 0.0
    %1031 = vmatprep.subr.mxu0 0.0
    %1032 = vmatpush1.msra.mxu0 0.0
    %1033 = vmatprep.subr.mxu0 0.0
    %1034 = vmatpush1.msra.mxu0 0.0
    %1035 = vmatprep.subr.mxu0 0.0
    %1036 = vmatpush1.msra.mxu0 0.0
    %1037 = vmatprep.subr.mxu0 0.0
    %1038 = vmatpush1.msra.mxu0 0.0
    %1039 = vmatprep.subr.mxu0 0.0
    %1040 = vmatpush1.msra.mxu0 0.0
    %1041 = vmatprep.subr.mxu0 0.0
    %1042 = vmatpush1.msra.mxu0 0.0
    %1043 = vmatprep.subr.mxu0 0.0
    %1044 = vmatpush1.msra.mxu0 0.0
    %1045 = vmatprep.subr.mxu0 0.0
    %1046 = vmatpush1.msra.mxu0 0.0
    %1047 = vmatprep.subr.mxu0 0.0
    %1048 = vmatpush1.msra.mxu0 0.0
    %1049 = vmatprep.subr.mxu0 0.0
    %1050 = vmatpush1.msra.mxu0 0.0
    %1051 = vmatprep.subr.mxu0 0.0
    %1052 = vmatpush1.msra.mxu0 0.0
    %1053 = vmatprep.subr.mxu0 0.0
    %1054 = vmatpush1.msra.mxu0 0.0
    %1055 = vmatprep.subr.mxu0 0.0
    %1056 = vmatpush1.msra.mxu0 0.0
    %1057 = vmatprep.subr.mxu0 0.0
    %1058 = vmatpush1.msra.mxu0 0.0
    %1059 = vmatprep.mubr.f32.mxu0 0.0
    %1060 = vmatmul.mubr.f32.gmra.mrb[0].mxu0 %v990
    %v1061 = vpop.f32.mrb[0].mxu0
    %v1062 = vadd.f32 0.0, %v1061
    %v1063 = vpop.f32.mrb[0].mxu0
    %1064 = vmatprep.mubr.f32.mxu0 0.0
    %1065 = vmatmul.mubr.f32.gmra.mrb[0].mxu0 %v993
    %v1066 = vpop.f32.mrb[0].mxu0
    %v1067 = vadd.f32 0.0, %v1066
    %v1068 = vpop.f32.mrb[0].mxu0
    %1069 = vdwg.mxu0
    %v1070 = vadd.f32 %v780, %v1062
    %v1071 = vadd.f32 %v785, %v1067
    %1072 = vrot.lane.b32.xlu0 %v204, 104
    %v1073 = vpop.permute.xlu0 %1072
    %1074 = vrot.lane.b32.xlu0 %v209, 104
    %v1075 = vpop.permute.xlu0 %1074
    %1076 = vrot.lane.b32.xlu0 %v214, 72
    %v1077 = vpop.permute.xlu0 %1076
    %1078 = vrot.lane.b32.xlu0 %v219, 72
    %v1079 = vpop.permute.xlu0 %1078
    %v1080 = vsel %vm228, %v1073, 0
    %v1082 = vsel %vm228, %v1075, 0
    %v1084 = vsel %vm228, %v1077, 0
    %v1086 = vsel %vm228, %v1079, 0
    %1088 = vmatprep.subr.mxu0 0.0
    %1089 = vmatpush1.xpose.msra.mxu0 %v1084
    %1090 = vmatprep.subr.mxu0 0.0
    %1091 = vmatpush1.xpose.msra.mxu0 %v1086
    %1092 = vmatprep.subr.mxu0 0.0
    %1093 = vmatpush1.xpose.msra.mxu0 0.0
    %1094 = vmatprep.subr.mxu0 0.0
    %1095 = vmatpush1.xpose.msra.mxu0 0.0
    %1096 = vmatprep.subr.mxu0 0.0
    %1097 = vmatpush1.xpose.msra.mxu0 0.0
    %1098 = vmatprep.subr.mxu0 0.0
    %1099 = vmatpush1.xpose.msra.mxu0 0.0
    %1100 = vmatprep.subr.mxu0 0.0
    %1101 = vmatpush1.xpose.msra.mxu0 0.0
    %1102 = vmatprep.subr.mxu0 0.0
    %1103 = vmatpush1.xpose.msra.mxu0 0.0
    %1104 = vmatprep.subr.mxu0 0.0
    %1105 = vmatpush1.xpose.msra.mxu0 0.0
    %1106 = vmatprep.subr.mxu0 0.0
    %1107 = vmatpush1.xpose.msra.mxu0 0.0
    %1108 = vmatprep.subr.mxu0 0.0
    %1109 = vmatpush1.xpose.msra.mxu0 0.0
    %1110 = vmatprep.subr.mxu0 0.0
    %1111 = vmatpush1.xpose.msra.mxu0 0.0
    %1112 = vmatprep.subr.mxu0 0.0
    %1113 = vmatpush1.xpose.msra.mxu0 0.0
    %1114 = vmatprep.subr.mxu0 0.0
    %1115 = vmatpush1.xpose.msra.mxu0 0.0
    %1116 = vmatprep.subr.mxu0 0.0
    %1117 = vmatpush1.xpose.msra.mxu0 0.0
    %1118 = vmatprep.subr.mxu0 0.0
    %1119 = vmatpush1.xpose.msra.mxu0 0.0
    %1120 = vmatprep.subr.mxu0 0.0
    %1121 = vmatpush1.xpose.msra.mxu0 0.0
    %1122 = vmatprep.subr.mxu0 0.0
    %1123 = vmatpush1.xpose.msra.mxu0 0.0
    %1124 = vmatprep.subr.mxu0 0.0
    %1125 = vmatpush1.xpose.msra.mxu0 0.0
    %1126 = vmatprep.subr.mxu0 0.0
    %1127 = vmatpush1.xpose.msra.mxu0 0.0
    %1128 = vmatprep.subr.mxu0 0.0
    %1129 = vmatpush1.xpose.msra.mxu0 0.0
    %1130 = vmatprep.subr.mxu0 0.0
    %1131 = vmatpush1.xpose.msra.mxu0 0.0
    %1132 = vmatprep.subr.mxu0 0.0
    %1133 = vmatpush1.xpose.msra.mxu0 0.0
    %1134 = vmatprep.subr.mxu0 0.0
    %1135 = vmatpush1.xpose.msra.mxu0 0.0
    %1136 = vmatprep.subr.mxu0 0.0
    %1137 = vmatpush1.xpose.msra.mxu0 0.0
    %1138 = vmatprep.subr.mxu0 0.0
    %1139 = vmatpush1.xpose.msra.mxu0 0.0
    %1140 = vmatprep.subr.mxu0 0.0
    %1141 = vmatpush1.xpose.msra.mxu0 0.0
    %1142 = vmatprep.subr.mxu0 0.0
    %1143 = vmatpush1.xpose.msra.mxu0 0.0
    %1144 = vmatprep.subr.mxu0 0.0
    %1145 = vmatpush1.xpose.msra.mxu0 0.0
    %1146 = vmatprep.subr.mxu0 0.0
    %1147 = vmatpush1.xpose.msra.mxu0 0.0
    %1148 = vmatprep.subr.mxu0 0.0
    %1149 = vmatpush1.xpose.msra.mxu0 0.0
    %1150 = vmatprep.subr.mxu0 0.0
    %1151 = vmatpush1.xpose.msra.mxu0 0.0
    %1152 = vmatprep.mubr.f32.mxu0 0.0
    %1153 = vmatmul.mubr.f32.gmra.mrb[0].mxu0 %v1080
    %v1154 = vpop.f32.mrb[0].mxu0
    %v1155 = vadd.f32 %v25, %v1154
    %v1156 = vpop.f32.mrb[0].mxu0
    %1157 = vmatprep.mubr.f32.mxu0 0.0
    %1158 = vmatmul.mubr.f32.gmra.mrb[0].mxu0 %v1082
    %v1159 = vpop.f32.mrb[0].mxu0
    %v1160 = vadd.f32 %v26, %v1159
    %v1161 = vpop.f32.mrb[0].mxu0
    %1162 = vdwg.mxu0
    %v1163 = vsel %vm314, %v1155, -inf
    %1164 = vmax.xlane.f32.xlu0 %v1163
    %v1165 = vpop.xlane.xlu0 %1164
    %v1166 = vsel %vm314, %v1160, -inf
    %1167 = vmax.xlane.f32.xlu0 %v1166
    %v1168 = vpop.xlane.xlu0 %1167
    %v1169 = vsub.f32 %v1155, %v1165
    %v1170 = vsub.f32 %v1160, %v1168
    %v1171 = vmul.f32 %v1169, 1.442695
    %v1172 = vpow.pop %v1171
    %v1173 = vmul.f32 %v1170, 1.442695
    %v1174 = vpow.pop %v1173
    %v1175 = vsel %vm314, %v1172, 0.0
    %1176 = vadd.xlane.f32.xlu0 %v1175
    %v1177 = vpop.xlane.xlu0 %1176
    %v1178 = vsel %vm314, %v1174, 0.0
    %1179 = vadd.xlane.f32.xlu0 %v1178
    %v1180 = vpop.xlane.xlu0 %1179
    %v1181 = vrcp.pop %v1177
    %v1182 = vrcp.pop %v1180
    %v1183 = vmul.f32 %v1172, %v1181
    %v1184 = vmul.f32 %v1174, %v1182
    %1185 = vrot.lane.b32.xlu0 %v214, 40
    %v1186 = vpop.permute.xlu0 %1185
    %1187 = vrot.lane.b32.xlu0 %v219, 40
    %v1188 = vpop.permute.xlu0 %1187
    %v1192 = vsel %vm314, %v1183, 0
    %v1195 = vsel %vm314, %v1184, 0
    %1197 = vmatprep.subr.mxu0 0.0
    %1198 = vmatpush1.msra.mxu0 %v1186
    %1199 = vmatprep.subr.mxu0 0.0
    %1200 = vmatpush1.msra.mxu0 %v1188
    %1201 = vmatprep.subr.mxu0 0.0
    %1202 = vmatpush1.msra.mxu0 0.0
    %1203 = vmatprep.subr.mxu0 0.0
    %1204 = vmatpush1.msra.mxu0 0.0
    %1205 = vmatprep.subr.mxu0 0.0
    %1206 = vmatpush1.msra.mxu0 0.0
    %1207 = vmatprep.subr.mxu0 0.0
    %1208 = vmatpush1.msra.mxu0 0.0
    %1209 = vmatprep.subr.mxu0 0.0
    %1210 = vmatpush1.msra.mxu0 0.0
    %1211 = vmatprep.subr.mxu0 0.0
    %1212 = vmatpush1.msra.mxu0 0.0
    %1213 = vmatprep.subr.mxu0 0.0
    %1214 = vmatpush1.msra.mxu0 0.0
    %1215 = vmatprep.subr.mxu0 0.0
    %1216 = vmatpush1.msra.mxu0 0.0
    %1217 = vmatprep.subr.mxu0 0.0
    %1218 = vmatpush1.msra.mxu0 0.0
    %1219 = vmatprep.subr.mxu0 0.0
    %1220 = vmatpush1.msra.mxu0 0.0
    %1221 = vmatprep.subr.mxu0 0.0
    %1222 = vmatpush1.msra.mxu0 0.0
    %1223 = vmatprep.subr.mxu0 0.0
    %1224 = vmatpush1.msra.mxu0 0.0
    %1225 = vmatprep.subr.mxu0 0.0
    %1226 = vmatpush1.msra.mxu0 0.0
    %1227 = vmatprep.subr.mxu0 0.0
    %1228 = vmatpush1.msra.mxu0 0.0
    %1229 = vmatprep.subr.mxu0 0.0
    %1230 = vmatpush1.msra.mxu0 0.0
    %1231 = vmatprep.subr.mxu0 0.0
    %1232 = vmatpush1.msra.mxu0 0.0
    %1233 = vmatprep.subr.mxu0 0.0
    %1234 = vmatpush1.msra.mxu0 0.0
    %1235 = vmatprep.subr.mxu0 0.0
    %1236 = vmatpush1.msra.mxu0 0.0
    %1237 = vmatprep.subr.mxu0 0.0
    %1238 = vmatpush1.msra.mxu0 0.0
    %1239 = vmatprep.subr.mxu0 0.0
    %1240 = vmatpush1.msra.mxu0 0.0
    %1241 = vmatprep.subr.mxu0 0.0
    %1242 = vmatpush1.msra.mxu0 0.0
    %1243 = vmatprep.subr.mxu0 0.0
    %1244 = vmatpush1.msra.mxu0 0.0
    %1245 = vmatprep.subr.mxu0 0.0
    %1246 = vmatpush1.msra.mxu0 0.0
    %1247 = vmatprep.subr.mxu0 0.0
    %1248 = vmatpush1.msra.mxu0 0.0
    %1249 = vmatprep.subr.mxu0 0.0
    %1250 = vmatpush1.msra.mxu0 0.0
    %1251 = vmatprep.subr.mxu0 0.0
    %1252 = vmatpush1.msra.mxu0 0.0
    %1253 = vmatprep.subr.mxu0 0.0
    %1254 = vmatpush1.msra.mxu0 0.0
    %1255 = vmatprep.subr.mxu0 0.0
    %1256 = vmatpush1.msra.mxu0 0.0
    %1257 = vmatprep.subr.mxu0 0.0
    %1258 = vmatpush1.msra.mxu0 0.0
    %1259 = vmatprep.subr.mxu0 0.0
    %1260 = vmatpush1.msra.mxu0 0.0
    %1261 = vmatprep.mubr.f32.mxu0 0.0
    %1262 = vmatmul.mubr.f32.gmra.mrb[0].mxu0 %v1192
    %v1263 = vpop.f32.mrb[0].mxu0
    %v1264 = vadd.f32 0.0, %v1263
    %v1265 = vpop.f32.mrb[0].mxu0
    %1266 = vmatprep.mubr.f32.mxu0 0.0
    %1267 = vmatmul.mubr.f32.gmra.mrb[0].mxu0 %v1195
    %v1268 = vpop.f32.mrb[0].mxu0
    %v1269 = vadd.f32 0.0, %v1268
    %v1270 = vpop.f32.mrb[0].mxu0
    %1271 = vdwg.mxu0
    %v1272 = vld [vmem:[%s2 + $0x38] sm:$0xff]
    %v1274 = vsel %vm228, %v1264, 0
    %v1277 = vsel %vm228, %v1269, 0
    %1279 = vmatprep.subr.mxu0 0.0
    %1280 = vmatpush1.msra.mxu0 %v1272
    %1281 = vmatprep.subr.mxu0 0.0
    %1282 = vmatpush1.msra.mxu0 0.0
    %1283 = vmatprep.subr.mxu0 0.0
    %1284 = vmatpush1.msra.mxu0 0.0
    %1285 = vmatprep.subr.mxu0 0.0
    %1286 = vmatpush1.msra.mxu0 0.0
    %1287 = vmatprep.subr.mxu0 0.0
    %1288 = vmatpush1.msra.mxu0 0.0
    %1289 = vmatprep.subr.mxu0 0.0
    %1290 = vmatpush1.msra.mxu0 0.0
    %1291 = vmatprep.subr.mxu0 0.0
    %1292 = vmatpush1.msra.mxu0 0.0
    %1293 = vmatprep.subr.mxu0 0.0
    %1294 = vmatpush1.msra.mxu0 0.0
    %1295 = vmatprep.subr.mxu0 0.0
    %1296 = vmatpush1.msra.mxu0 0.0
    %1297 = vmatprep.subr.mxu0 0.0
    %1298 = vmatpush1.msra.mxu0 0.0
    %1299 = vmatprep.subr.mxu0 0.0
    %1300 = vmatpush1.msra.mxu0 0.0
    %1301 = vmatprep.subr.mxu0 0.0
    %1302 = vmatpush1.msra.mxu0 0.0
    %1303 = vmatprep.subr.mxu0 0.0
    %1304 = vmatpush1.msra.mxu0 0.0
    %1305 = vmatprep.subr.mxu0 0.0
    %1306 = vmatpush1.msra.mxu0 0.0
    %1307 = vmatprep.subr.mxu0 0.0
    %1308 = vmatpush1.msra.mxu0 0.0
    %1309 = vmatprep.subr.mxu0 0.0
    %1310 = vmatpush1.msra.mxu0 0.0
    %1311 = vmatprep.subr.mxu0 0.0
    %1312 = vmatpush1.msra.mxu0 0.0
    %1313 = vmatprep.subr.mxu0 0.0
    %1314 = vmatpush1.msra.mxu0 0.0
    %1315 = vmatprep.subr.mxu0 0.0
    %1316 = vmatpush1.msra.mxu0 0.0
    %1317 = vmatprep.subr.mxu0 0.0
    %1318 = vmatpush1.msra.mxu0 0.0
    %1319 = vmatprep.subr.mxu0 0.0
    %1320 = vmatpush1.msra.mxu0 0.0
    %1321 = vmatprep.subr.mxu0 0.0
    %1322 = vmatpush1.msra.mxu0 0.0
    %1323 = vmatprep.subr.mxu0 0.0
    %1324 = vmatpush1.msra.mxu0 0.0
    %1325 = vmatprep.subr.mxu0 0.0
    %1326 = vmatpush1.msra.mxu0 0.0
    %1327 = vmatprep.subr.mxu0 0.0
    %1328 = vmatpush1.msra.mxu0 0.0
    %1329 = vmatprep.subr.mxu0 0.0
    %1330 = vmatpush1.msra.mxu0 0.0
    %1331 = vmatprep.subr.mxu0 0.0
    %1332 = vmatpush1.msra.mxu0 0.0
    %1333 = vmatprep.subr.mxu0 0.0
    %1334 = vmatpush1.msra.mxu0 0.0
    %1335 = vmatprep.subr.mxu0 0.0
    %1336 = vmatpush1.msra.mxu0 0.0
    %1337 = vmatprep.subr.mxu0 0.0
    %1338 = vmatpush1.msra.mxu0 0.0
    %1339 = vmatprep.subr.mxu0 0.0
    %1340 = vmatpush1.msra.mxu0 0.0
    %1341 = vmatprep.subr.mxu0 0.0
    %1342 = vmatpush1.msra.mxu0 0.0
    %1343 = vmatprep.mubr.f32.mxu0 0.0
    %1344 = vmatmul.mubr.f32.gmra.mrb[0].mxu0 %v1274
    %v1345 = vpop.f32.mrb[0].mxu0
    %v1346 = vadd.f32 0.0, %v1345
    %v1347 = vpop.f32.mrb[0].mxu0
    %1348 = vmatprep.mubr.f32.mxu0 0.0
    %1349 = vmatmul.mubr.f32.gmra.mrb[0].mxu0 %v1277
    %v1350 = vpop.f32.mrb[0].mxu0
    %v1351 = vadd.f32 0.0, %v1350
    %v1352 = vpop.f32.mrb[0].mxu0
    %1353 = vdwg.mxu0
    %v1354 = vadd.f32 %v1070, %v1346
    %v1355 = vadd.f32 %v1071, %v1351
    %v1356 = vadd.f32 %v15, %v1354
    %v1357 = vadd.f32 %v16, %v1355
    %v1358 = vlaneseq
    %v1359 = vshrl.u32 %v1358, 7
    %v1360 = vsub.s32 0, %v1359
    %v1361 = vrot.slane %v46, %v1360
    %v1362 = vadd.f32 %v1356, %v1361
    %v1363 = vadd.f32 %v1357, %v1361
    %v1364 = vsel %vm51, %v1362, 0.0
    %1365 = vadd.xlane.f32.xlu0 %v1364
    %v1366 = vpop.xlane.xlu0 %1365
    %v1367 = vsel %vm51, %v1363, 0.0
    %1368 = vadd.xlane.f32.xlu0 %v1367
    %v1369 = vpop.xlane.xlu0 %1368
    %v1370 = vmul.f32 %v1366, %v64
    %v1371 = vmul.f32 %v1369, %v64
    %v1372 = vsub.f32 %v1362, %v1370
    %v1373 = vsub.f32 %v1363, %v1371
    %v1374 = vmul.f32 %v1372, %v1372
    %v1375 = vmul.f32 %v1373, %v1373
    %v1376 = vsel %vm51, %v1374, 0.0
    %1377 = vadd.xlane.f32.xlu0 %v1376
    %v1378 = vpop.xlane.xlu0 %1377
    %v1379 = vsel %vm51, %v1375, 0.0
    %1380 = vadd.xlane.f32.xlu0 %v1379
    %v1381 = vpop.xlane.xlu0 %1380
    %v1382 = vmul.f32 %v1378, %v64
    %v1383 = vmul.f32 %v1381, %v64
    %v1384 = vadd.f32 %v1382, 1e-05
    %v1385 = vadd.f32 %v1383, 1e-05
    %v1386 = vrsqrt.pop %v1384
    %v1387 = vrsqrt.pop %v1385
    %v1388 = vmul.f32 %v1372, %v1386
    %v1389 = vmul.f32 %v1373, %v1387
    %v1390 = vlaneseq
    %v1391 = vshrl.u32 %v1390, 7
    %v1392 = vsub.s32 0, %v1391
    %v1393 = vrot.slane %v47, %v1392
    %v1394 = vmul.f32 %v1388, %v1393
    %v1395 = vmul.f32 %v1389, %v1393
    %v1396 = vlaneseq
    %v1397 = vshrl.u32 %v1396, 7
    %v1398 = vsub.s32 0, %v1397
    %v1399 = vrot.slane %v48, %v1398
    %v1400 = vadd.f32 %v1394, %v1399
    %v1401 = vadd.f32 %v1395, %v1399
    %v1402 = vlaneseq
    %v1403 = vshrl.u32 %v1402, 7
    %v1404 = vsub.s32 0, %v1403
    %v1405 = vrot.slane %v49, %v1404
    %v1407 = vsel %vm51, %v1400, 0
    %v1410 = vsel %vm51, %v1401, 0
    %1412 = vmatprep.subr.mxu0 0.0
    %1413 = vmatpush1.msra.mxu0 %v31
    %1414 = vmatprep.subr.mxu0 0.0
    %1415 = vmatpush1.msra.mxu0 %v32
    %1416 = vmatprep.subr.mxu0 0.0
    %1417 = vmatpush1.msra.mxu0 %v33
    %1418 = vmatprep.subr.mxu0 0.0
    %1419 = vmatpush1.msra.mxu0 %v34
    %1420 = vmatprep.subr.mxu0 0.0
    %1421 = vmatpush1.msra.mxu0 0.0
    %1422 = vmatprep.subr.mxu0 0.0
    %1423 = vmatpush1.msra.mxu0 0.0
    %1424 = vmatprep.subr.mxu0 0.0
    %1425 = vmatpush1.msra.mxu0 0.0
    %1426 = vmatprep.subr.mxu0 0.0
    %1427 = vmatpush1.msra.mxu0 0.0
    %1428 = vmatprep.subr.mxu0 0.0
    %1429 = vmatpush1.msra.mxu0 0.0
    %1430 = vmatprep.subr.mxu0 0.0
    %1431 = vmatpush1.msra.mxu0 0.0
    %1432 = vmatprep.subr.mxu0 0.0
    %1433 = vmatpush1.msra.mxu0 0.0
    %1434 = vmatprep.subr.mxu0 0.0
    %1435 = vmatpush1.msra.mxu0 0.0
    %1436 = vmatprep.subr.mxu0 0.0
    %1437 = vmatpush1.msra.mxu0 0.0
    %1438 = vmatprep.subr.mxu0 0.0
    %1439 = vmatpush1.msra.mxu0 0.0
    %1440 = vmatprep.subr.mxu0 0.0
    %1441 = vmatpush1.msra.mxu0 0.0
    %1442 = vmatprep.subr.mxu0 0.0
    %1443 = vmatpush1.msra.mxu0 0.0
    %1444 = vmatprep.subr.mxu0 0.0
    %1445 = vmatpush1.msra.mxu0 0.0
    %1446 = vmatprep.subr.mxu0 0.0
    %1447 = vmatpush1.msra.mxu0 0.0
    %1448 = vmatprep.subr.mxu0 0.0
    %1449 = vmatpush1.msra.mxu0 0.0
    %1450 = vmatprep.subr.mxu0 0.0
    %1451 = vmatpush1.msra.mxu0 0.0
    %1452 = vmatprep.subr.mxu0 0.0
    %1453 = vmatpush1.msra.mxu0 0.0
    %1454 = vmatprep.subr.mxu0 0.0
    %1455 = vmatpush1.msra.mxu0 0.0
    %1456 = vmatprep.subr.mxu0 0.0
    %1457 = vmatpush1.msra.mxu0 0.0
    %1458 = vmatprep.subr.mxu0 0.0
    %1459 = vmatpush1.msra.mxu0 0.0
    %1460 = vmatprep.subr.mxu0 0.0
    %1461 = vmatpush1.msra.mxu0 0.0
    %1462 = vmatprep.subr.mxu0 0.0
    %1463 = vmatpush1.msra.mxu0 0.0
    %1464 = vmatprep.subr.mxu0 0.0
    %1465 = vmatpush1.msra.mxu0 0.0
    %1466 = vmatprep.subr.mxu0 0.0
    %1467 = vmatpush1.msra.mxu0 0.0
    %1468 = vmatprep.subr.mxu0 0.0
    %1469 = vmatpush1.msra.mxu0 0.0
    %1470 = vmatprep.subr.mxu0 0.0
    %1471 = vmatpush1.msra.mxu0 0.0
    %1472 = vmatprep.subr.mxu0 0.0
    %1473 = vmatpush1.msra.mxu0 0.0
    %1474 = vmatprep.subr.mxu0 0.0
    %1475 = vmatpush1.msra.mxu0 0.0
    %1476 = vmatprep.mubr.f32.mxu0 0.0
    %1477 = vmatmul.mubr.f32.gmra.mrb[0].mxu0 %v1407
    %v1478 = vpop.f32.mrb[0].mxu0
    %v1479 = vadd.f32 %v1405, %v1478
    %v1480 = vpop.f32.mrb[0].mxu0
    %1481 = vmatprep.mubr.f32.mxu0 0.0
    %1482 = vmatmul.mubr.f32.gmra.mrb[0].mxu0 %v1410
    %v1483 = vpop.f32.mrb[0].mxu0
    %v1484 = vadd.f32 %v1405, %v1483
    %v1485 = vpop.f32.mrb[0].mxu0
    %1486 = vdwg.mxu0
    %v1487 = vmax.f32 %v1479, 0.0
    %v1488 = vmax.f32 %v1484, 0.0
    %v1489 = vlaneseq
    %v1490 = vshrl.u32 %v1489, 7
    %v1491 = vsub.s32 0, %v1490
    %v1492 = vrot.slane %v50, %v1491
    %vm1493 = vcmask 523264
    %v1495 = vsel %vm1493, %v1487, 0
    %v1498 = vsel %vm1493, %v1488, 0
    %1500 = vmatprep.subr.mxu0 0.0
    %1501 = vmatpush1.msra.mxu0 %v35
    %1502 = vmatprep.subr.mxu0 0.0
    %1503 = vmatpush1.msra.mxu0 %v36
    %1504 = vmatprep.subr.mxu0 0.0
    %1505 = vmatpush1.msra.mxu0 %v37
    %1506 = vmatprep.subr.mxu0 0.0
    %1507 = vmatpush1.msra.mxu0 %v38
    %1508 = vmatprep.subr.mxu0 0.0
    %1509 = vmatpush1.msra.mxu0 %v39
    %1510 = vmatprep.subr.mxu0 0.0
    %1511 = vmatpush1.msra.mxu0 %v40
    %1512 = vmatprep.subr.mxu0 0.0
    %1513 = vmatpush1.msra.mxu0 %v41
    %1514 = vmatprep.subr.mxu0 0.0
    %1515 = vmatpush1.msra.mxu0 %v42
    %1516 = vmatprep.subr.mxu0 0.0
    %1517 = vmatpush1.msra.mxu0 0.0
    %1518 = vmatprep.subr.mxu0 0.0
    %1519 = vmatpush1.msra.mxu0 0.0
    %1520 = vmatprep.subr.mxu0 0.0
    %1521 = vmatpush1.msra.mxu0 0.0
    %1522 = vmatprep.subr.mxu0 0.0
    %1523 = vmatpush1.msra.mxu0 0.0
    %1524 = vmatprep.subr.mxu0 0.0
    %1525 = vmatpush1.msra.mxu0 0.0
    %1526 = vmatprep.subr.mxu0 0.0
    %1527 = vmatpush1.msra.mxu0 0.0
    %1528 = vmatprep.subr.mxu0 0.0
    %1529 = vmatpush1.msra.mxu0 0.0
    %1530 = vmatprep.subr.mxu0 0.0
    %1531 = vmatpush1.msra.mxu0 0.0
    %1532 = vmatprep.subr.mxu0 0.0
    %1533 = vmatpush1.msra.mxu0 0.0
    %1534 = vmatprep.subr.mxu0 0.0
    %1535 = vmatpush1.msra.mxu0 0.0
    %1536 = vmatprep.subr.mxu0 0.0
    %1537 = vmatpush1.msra.mxu0 0.0
    %1538 = vmatprep.subr.mxu0 0.0
    %1539 = vmatpush1.msra.mxu0 0.0
    %1540 = vmatprep.subr.mxu0 0.0
    %1541 = vmatpush1.msra.mxu0 0.0
    %1542 = vmatprep.subr.mxu0 0.0
    %1543 = vmatpush1.msra.mxu0 0.0
    %1544 = vmatprep.subr.mxu0 0.0
    %1545 = vmatpush1.msra.mxu0 0.0
    %1546 = vmatprep.subr.mxu0 0.0
    %1547 = vmatpush1.msra.mxu0 0.0
    %1548 = vmatprep.subr.mxu0 0.0
    %1549 = vmatpush1.msra.mxu0 0.0
    %1550 = vmatprep.subr.mxu0 0.0
    %1551 = vmatpush1.msra.mxu0 0.0
    %1552 = vmatprep.subr.mxu0 0.0
    %1553 = vmatpush1.msra.mxu0 0.0
    %1554 = vmatprep.subr.mxu0 0.0
    %1555 = vmatpush1.msra.mxu0 0.0
    %1556 = vmatprep.subr.mxu0 0.0
    %1557 = vmatpush1.msra.mxu0 0.0
    %1558 = vmatprep.subr.mxu0 0.0
    %1559 = vmatpush1.msra.mxu0 0.0
    %1560 = vmatprep.subr.mxu0 0.0
    %1561 = vmatpush1.msra.mxu0 0.0
    %1562 = vmatprep.subr.mxu0 0.0
    %1563 = vmatpush1.msra.mxu0 0.0
    %1564 = vmatprep.mubr.f32.mxu0 0.0
    %1565 = vmatmul.mubr.f32.gmra.mrb[0].mxu0 %v1495
    %v1566 = vpop.f32.mrb[0].mxu0
    %v1567 = vadd.f32 %v1492, %v1566
    %v1568 = vpop.f32.mrb[0].mxu0
    %1569 = vmatprep.mubr.f32.mxu0 0.0
    %1570 = vmatmul.mubr.f32.gmra.mrb[0].mxu0 %v1498
    %v1571 = vpop.f32.mrb[0].mxu0
    %v1572 = vadd.f32 %v1492, %v1571
    %v1573 = vpop.f32.mrb[0].mxu0
    %1574 = vdwg.mxu0
    %v1575 = vadd.f32 %v1362, %v1567
    %v1576 = vadd.f32 %v1363, %v1572
    %1577 = vst.msk [vmem:[#allocation2] sm:$0xff] %vm51, %v1575
    %1578 = vst.msk [vmem:[#allocation2 + $0x8] sm:$0xff] %vm51, %v1576
    // Predicated region
    $region14: #{encoder_layer.1} parent=1 // pred_check
      _
    $region15: #{encoder_layer.1} parent=1 // pred_check_branch
      %1580 = sbr.rel (0) target = $region17
    $region16: #{encoder_layer.1} parent=1 // pred_region
      %s1582 = ssub.s32 256, 256
      %1583 = vsyncadd [#allocation3], %s1582
      %s1584 = sshll.u32 [#allocation2], 4
      %s1585 = int_to_ptr.vmem [resolvable:$true] %s1584
      %1590 = dma.vmem_to_hbm [thread:$0]  %s1585, 256, %s3, [#allocation3], 128, 128, 8
    $region17: #{encoder_layer.1} parent=1 // pred_fallthru
      _
    // Predicated region
    $region18: #{encoder_layer.1} parent=1 // pred_check
      _
    $region19: #{encoder_layer.1} parent=1 // pred_check_branch
      %1592 = sbr.rel (0) target = $region21
    $region20: #{encoder_layer.1} parent=1 // pred_region
      %1593 = dma.done [#allocation3], 256
    $region21: #{encoder_layer.1} parent=1 // pred_fallthru
      _
    %1594 = vsyncpa [#allocation3], 1

</llo_original>
